<compile_context>
chip_gen: v7x
topology: tpu7x:2x2x1
jax: 0.10.0
libtpu: 0.0.40
codegen_flags: <defaults>
</compile_context>

<pallas_src>
import functools

import jax
import jax.numpy as jnp
from jax import lax
from jax.experimental import pallas as pl
from jax.experimental.pallas import tpu as pltpu

DT = 1.0
R_M = 1.0
THRESH = 1.0

_LANE = 128
_SUBLANE_BF16 = 16  # bf16 packs 16 sublanes per vreg


def _round_up(x, m):
    return ((x + m - 1) // m) * m


# -----------------------------------------------------------------------------
# Parameter preparation (done ONCE, not per timestep)
# -----------------------------------------------------------------------------
def prepare_params(w_dense, b_dense, w_rec, b_rec, tau_m, dt=DT, r_m=R_M):
    """Pre-transposed / padded / fused parameters.

    w_dense [O, I], w_rec [O, O], b_dense/b_rec/tau_m [O] (all f32).
    Returns dict with:
      wd_t   [I_pad, O_pad] bf16   (W_dense^T, zero padded) -- used in the hoisted matmul
      wr_t   [O_pad, O_pad] bf16   (W_rec^T,   zero padded) -- resident in the kernel
      bias   [1, O_pad]     f32    (b_dense + b_rec) -- folded into the hoisted matmul
      consts [8, O_pad]     f32    row0 = alpha = exp(-dt/tau), row1 = (1-alpha)*R_m
    """
    O, I = w_dense.shape
    i_pad = _round_up(I, _LANE)
    o_pad = _round_up(O, _LANE)

    wd_t = jnp.zeros((i_pad, o_pad), jnp.float32).at[:I, :O].set(w_dense.T)
    wr_t = jnp.zeros((o_pad, o_pad), jnp.float32).at[:O, :O].set(w_rec.T)

    bias = jnp.zeros((1, o_pad), jnp.float32).at[0, :O].set(b_dense + b_rec)

    alpha_o = jnp.exp(-dt / tau_m)
    consts = jnp.zeros((8, o_pad), jnp.float32)
    consts = consts.at[0, :O].set(alpha_o)
    consts = consts.at[1, :O].set((1.0 - alpha_o) * r_m)

    return dict(wd_t=wd_t.astype(jnp.bfloat16), wr_t=wr_t.astype(jnp.bfloat16),
                bias=bias, consts=consts,
                input_dim=I, output_dim=O, i_pad=i_pad, o_pad=o_pad)


# -----------------------------------------------------------------------------
# Recurrent kernel: grid = (batch_tiles, T // TT); time is the sequential axis.
# State (mem, prev spike) is carried across time-blocks in VMEM scratch.
# -----------------------------------------------------------------------------
def _lif_recurrent_kernel(dd_ref, mem0_ref, spike0_ref, wr_ref, consts_ref,
                          mem_out_ref, spike_out_ref,
                          mem_ref, spike_ref, *, tt):
    ti = pl.program_id(1)

    @pl.when(ti == 0)
    def _init():
        mem_ref[...] = mem0_ref[...]
        spike_ref[...] = spike0_ref[...].astype(jnp.bfloat16)

    tb, op = mem_ref.shape
    # Hoist constant loads / broadcasts OUT of the unrolled time loop.
    alpha = jnp.broadcast_to(consts_ref[0:1, :], (tb, op))
    beta = jnp.broadcast_to(consts_ref[1:2, :], (tb, op))
    wr = wr_ref[...]

    def step(s, carry):
        spike_bf = spike_ref[...]                                   # exactly 0/1, bf16
        rec = jnp.dot(spike_bf, wr, preferred_element_type=jnp.float32)
        d_input = dd_ref[s] + rec                                   # dense part precomputed
        new_mem = (mem_ref[...] * alpha + beta * d_input
                   - THRESH * spike_bf.astype(jnp.float32))
        new_spike = new_mem > THRESH
        mem_ref[...] = new_mem
        spike_ref[...] = new_spike.astype(jnp.bfloat16)
        mem_out_ref[s] = new_mem
        spike_out_ref[s] = new_spike.astype(jnp.bfloat16)
        return carry

    lax.fori_loop(0, tt, step, 0, unroll=True)


# -----------------------------------------------------------------------------
# Wrappers
# -----------------------------------------------------------------------------
def spike_rnn_lif_forward_seq(input_spikes, mem0, spike0, params, *,
                              tile_b=None, tt=None):
    """Runs T timesteps of the layer.

    input_spikes [T, B, I], mem0/spike0 [B, O].
    Returns (mem_seq f32, spike_seq bf16), each [T, B, O]; spikes are exactly 0/1.
    """
    T, B, I = input_spikes.shape
    O = params["output_dim"]
    i_pad, o_pad = params["i_pad"], params["o_pad"]

    if tile_b is None:
        tile_b = min(128, _round_up(B, _SUBLANE_BF16))
    b_pad = _round_up(max(B, tile_b), tile_b)
    if tt is None:
        tt = max(1, min(T, 16))
    t_pad = _round_up(T, tt)

    # ---- Stage 1 (hoisted): one big dense projection for ALL timesteps ----
    # [t_pad*b_pad, I_pad] @ [I_pad, O_pad] bf16 matmul, f32 accumulation, bias folded in.
    x = jnp.zeros((t_pad, b_pad, i_pad), jnp.bfloat16)
    x = x.at[:T, :B, :I].set(input_spikes.astype(jnp.bfloat16))
    d_dense = (jnp.dot(x.reshape(t_pad * b_pad, i_pad), params["wd_t"],
                       preferred_element_type=jnp.float32)
               .reshape(t_pad, b_pad, o_pad) + params["bias"])

    m0 = jnp.zeros((b_pad, o_pad), jnp.float32).at[:B, :O].set(mem0)
    s0 = jnp.zeros((b_pad, o_pad), jnp.float32).at[:B, :O].set(spike0)

    # ---- Stage 2: sequential recurrent LIF kernel (time-blocked) ----
    grid = (b_pad // tile_b, t_pad // tt)
    const_map = lambda b, t: (0, 0)       # resident weights / constants
    state_map = lambda b, t: (b, 0)       # initial state: depends only on batch tile
    seq_map = lambda b, t: (t, b, 0)      # per time-block

    kernel = functools.partial(_lif_recurrent_kernel, tt=tt)

    # Explicit scoped-VMEM budget (v5e default is only 16 MiB).
    vmem_est = (2 * o_pad * o_pad * 2                     # W_rec^T (double-buffered)
                + 2 * 8 * o_pad * 4                       # consts
                + 2 * tt * tile_b * o_pad * 4             # d_dense blocks
                + 2 * tt * tile_b * o_pad * (4 + 2)       # mem/spike output blocks
                + 2 * 2 * tile_b * o_pad * 4              # mem0/spike0 blocks
                + tile_b * o_pad * (4 + 2))               # state scratch
    vmem_limit = int(min(max(2 * vmem_est, 32 * 1024 * 1024), 64 * 1024 * 1024))

    mem_seq, spike_seq = pl.pallas_call(
        kernel,
        out_shape=(
            jax.ShapeDtypeStruct((t_pad, b_pad, o_pad), jnp.float32),
            jax.ShapeDtypeStruct((t_pad, b_pad, o_pad), jnp.bfloat16),
        ),
        grid_spec=pltpu.PrefetchScalarGridSpec(
            num_scalar_prefetch=0,
            grid=grid,
            in_specs=[
                pl.BlockSpec((tt, tile_b, o_pad), seq_map),     # d_dense time-block
                pl.BlockSpec((tile_b, o_pad), state_map),       # mem0
                pl.BlockSpec((tile_b, o_pad), state_map),       # spike0
                pl.BlockSpec((o_pad, o_pad), const_map),        # W_rec^T (resident)
                pl.BlockSpec((8, o_pad), const_map),            # [alpha; beta] (resident)
            ],
            out_specs=[
                pl.BlockSpec((tt, tile_b, o_pad), seq_map),     # mem per time-block
                pl.BlockSpec((tt, tile_b, o_pad), seq_map),     # spike per time-block (bf16)
            ],
            scratch_shapes=[
                pltpu.VMEM((tile_b, o_pad), jnp.float32),       # membrane state
                pltpu.VMEM((tile_b, o_pad), jnp.bfloat16),      # spike state (MXU LHS)
            ],
        ),
        compiler_params=pltpu.CompilerParams(
            dimension_semantics=("parallel", "arbitrary"),
            vmem_limit_bytes=vmem_limit),
    )(d_dense, m0, s0, params["wr_t"], params["consts"])

    return mem_seq[:T, :B, :O], spike_seq[:T, :B, :O]


def spike_rnn_lif_forward(input_spike, spike, mem, params):
    """Single-timestep forward matching the PyTorch module API: returns (mem, spike)."""
    mem_seq, spike_seq = spike_rnn_lif_forward_seq(input_spike[None], mem, spike, params)
    return mem_seq[0], spike_seq[0].astype(jnp.float32)


# -----------------------------------------------------------------------------
# Pure-JAX reference (same bf16-on-MXU quantization and accumulation order:
# dense projection + bias hoisted, then per-step recurrent dot added).
# -----------------------------------------------------------------------------
def _reference_seq(input_spikes, mem0, spike0, w_dense, b_dense, w_rec, b_rec, tau_m):
    alpha = jnp.exp(-DT / tau_m)
    beta = (1.0 - alpha) * R_M
    wd_bf = w_dense.T.astype(jnp.bfloat16)
    wr_bf = w_rec.T.astype(jnp.bfloat16)
    bias = b_dense + b_rec

    d_dense = jnp.dot(input_spikes.astype(jnp.bfloat16), wd_bf,
                      preferred_element_type=jnp.float32) + bias

    def step(carry, dd):
        mem, spike = carry
        d = dd + jnp.dot(spike.astype(jnp.bfloat16), wr_bf,
                         preferred_element_type=jnp.float32)
        new_mem = mem * alpha + beta * d - THRESH * spike
        new_spike = (new_mem > THRESH).astype(jnp.float32)
        return (new_mem, new_spike), (new_mem, new_spike)

    _, (mem_seq, spike_seq) = lax.scan(step, (mem0, spike0), d_dense)
    return mem_seq, spike_seq


def _spikes_match(spike_kernel_f32, spike_ref, mem_ref):
    # Spikes may legitimately flip only where the membrane sits within float
    # rounding of the threshold (accumulation-order sensitive).
    near_thresh = jnp.abs(mem_ref - THRESH) < 1e-3
    return bool(jnp.all(jnp.logical_or(spike_kernel_f32 == spike_ref, near_thresh)))


if __name__ == "__main__":
    batch = 2
    input_dim = 32
    output_dim = 32
    T = 8

    key = jax.random.PRNGKey(0)
    k_x, k_wd, k_bd, k_wr, k_br, k_tau, k_s, k_m = jax.random.split(key, 8)

    # Deterministic parameter init mirroring nn.Linear / nn.init.normal_ shapes.
    bound_d = 1.0 / jnp.sqrt(input_dim)
    bound_r = 1.0 / jnp.sqrt(output_dim)
    w_dense = jax.random.uniform(k_wd, (output_dim, input_dim), jnp.float32, -bound_d, bound_d)
    b_dense = jax.random.uniform(k_bd, (output_dim,), jnp.float32, -bound_d, bound_d)
    w_rec = jax.random.uniform(k_wr, (output_dim, output_dim), jnp.float32, -bound_r, bound_r)
    b_rec = jax.random.uniform(k_br, (output_dim,), jnp.float32, -bound_r, bound_r)
    tau_m = 20.0 + 5.0 * jax.random.normal(k_tau, (output_dim,), jnp.float32)

    # Prepared (fused / transposed / padded) parameters -- built once for all timesteps.
    params = prepare_params(w_dense, b_dense, w_rec, b_rec, tau_m)

    # Binary input spike train; state initialized nonzero to exercise the recurrent
    # path and the soft reset (set_neuron_state() would use zeros).
    input_spikes = (jax.random.uniform(k_x, (T, batch, input_dim)) > 0.5).astype(jnp.float32)
    mem0 = jax.random.uniform(k_m, (batch, output_dim), jnp.float32, 0.0, 1.2)
    spike0 = (jax.random.uniform(k_s, (batch, output_dim)) > 0.7).astype(jnp.float32)

    # Fused multi-timestep kernel.
    mem_seq, spike_seq = spike_rnn_lif_forward_seq(input_spikes, mem0, spike0, params)
    jax.block_until_ready((mem_seq, spike_seq))

    # Reference check (per-step trajectories).
    ref_mem, ref_spike = _reference_seq(input_spikes, mem0, spike0,
                                        w_dense, b_dense, w_rec, b_rec, tau_m)
    assert jnp.allclose(mem_seq, ref_mem, atol=1e-4, rtol=1e-4), "mem mismatch"
    assert _spikes_match(spike_seq.astype(jnp.float32), ref_spike, ref_mem), "spike mismatch"

    # Single-step API (module-equivalent forward) sanity check.
    mem1, spike1 = spike_rnn_lif_forward(input_spikes[0], spike0, mem0, params)
    jax.block_until_ready((mem1, spike1))
    assert jnp.allclose(mem1, ref_mem[0], atol=1e-4, rtol=1e-4), "step mem mismatch"
    assert _spikes_match(spike1, ref_spike[0], ref_mem[0]), "step spike mismatch"

    print("KERNEL_OK")
</pallas_src>

<mosaic_0001>
module attributes {stable_mosaic.version = 11 : i64} {
  func.func @_lif_recurrent_kernel(%arg0: i32, %arg1: i32, %arg2: memref<8x16x128xf32, #tpu.memory_space<vmem>>, %arg3: memref<16x128xf32, #tpu.memory_space<vmem>>, %arg4: memref<16x128xf32, #tpu.memory_space<vmem>>, %arg5: memref<128x128xbf16, #tpu.memory_space<vmem>>, %arg6: memref<8x128xf32, #tpu.memory_space<vmem>>, %arg7: memref<8x16x128xf32, #tpu.memory_space<vmem>>, %arg8: memref<8x16x128xbf16, #tpu.memory_space<vmem>>, %arg9: memref<16x128xf32, #tpu.memory_space<vmem>>, %arg10: memref<16x128xbf16, #tpu.memory_space<vmem>>) attributes {dimension_semantics = [#tpu.dimension_semantics<parallel>, #tpu.dimension_semantics<arbitrary>], iteration_bounds = array<i64: 1, 1>, scalar_prefetch = 0 : i64, scratch_operands = 2 : i64, tpu.core_type = #tpu.core_type<tc>, window_params = [{transform_indices = @transform_0, window_bounds = array<i64: 8, 16, 128>}, {transform_indices = @transform_1, window_bounds = array<i64: 16, 128>}, {transform_indices = @transform_2, window_bounds = array<i64: 16, 128>}, {pipeline_mode = #tpu.pipeline_mode<synchronous>, transform_indices = @transform_3, window_bounds = array<i64: 128, 128>}, {pipeline_mode = #tpu.pipeline_mode<synchronous>, transform_indices = @transform_4, window_bounds = array<i64: 8, 128>}, {transform_indices = @transform_5, window_bounds = array<i64: 8, 16, 128>}, {transform_indices = @transform_6, window_bounds = array<i64: 8, 16, 128>}]} {
    %c0_i32 = arith.constant 0 : i32
    %0 = arith.cmpi eq, %arg1, %c0_i32 : i32
    %1 = arith.extui %0 : i1 to i32
    %c0_i32_0 = arith.constant 0 : i32
    %2 = arith.cmpi ne, %1, %c0_i32_0 : i32
    scf.if %2 {
      %c0_141 = arith.constant 0 : index
      %c0_142 = arith.constant 0 : index
      %266 = vector.load %arg3[%c0_141, %c0_142] : memref<16x128xf32, #tpu.memory_space<vmem>>, vector<16x128xf32>
      %c0_143 = arith.constant 0 : index
      %c0_144 = arith.constant 0 : index
      %267 = vector.load %arg9[%c0_143, %c0_144] : memref<16x128xf32, #tpu.memory_space<vmem>>, vector<16x128xf32>
      tpu.vector_store %arg9[%c0_143, %c0_144], %266 {strides = array<i32>} : memref<16x128xf32, #tpu.memory_space<vmem>>, vector<16x128xf32>,
      %c0_145 = arith.constant 0 : index
      %c0_146 = arith.constant 0 : index
      %268 = vector.load %arg4[%c0_145, %c0_146] : memref<16x128xf32, #tpu.memory_space<vmem>>, vector<16x128xf32>
      %269 = arith.truncf %268 : vector<16x128xf32> to vector<16x128xbf16>
      %c0_147 = arith.constant 0 : index
      %c0_148 = arith.constant 0 : index
      %270 = vector.load %arg10[%c0_147, %c0_148] : memref<16x128xbf16, #tpu.memory_space<vmem>>, vector<16x128xbf16>
      tpu.vector_store %arg10[%c0_147, %c0_148], %269 {strides = array<i32>} : memref<16x128xbf16, #tpu.memory_space<vmem>>, vector<16x128xbf16>,
    } else {
    }
    %c0 = arith.constant 0 : index
    %c0_1 = arith.constant 0 : index
    %3 = vector.load %arg6[%c0, %c0_1] : memref<8x128xf32, #tpu.memory_space<vmem>>, vector<1x128xf32>
    %4 = vector.shape_cast %3 : vector<1x128xf32> to vector<1x128xf32>
    %5 = vector.broadcast %4 : vector<1x128xf32> to vector<16x128xf32>
    %c1 = arith.constant 1 : index
    %c0_2 = arith.constant 0 : index
    %6 = vector.load %arg6[%c1, %c0_2] : memref<8x128xf32, #tpu.memory_space<vmem>>, vector<1x128xf32>
    %7 = vector.shape_cast %6 : vector<1x128xf32> to vector<1x128xf32>
    %8 = vector.broadcast %7 : vector<1x128xf32> to vector<16x128xf32>
    %c0_3 = arith.constant 0 : index
    %c0_4 = arith.constant 0 : index
    %9 = vector.load %arg5[%c0_3, %c0_4] : memref<128x128xbf16, #tpu.memory_space<vmem>>, vector<128x128xbf16>
    %c0_i32_5 = arith.constant 0 : i32
    %c0_6 = arith.constant 0 : index
    %c0_7 = arith.constant 0 : index
    %10 = vector.load %arg10[%c0_6, %c0_7] : memref<16x128xbf16, #tpu.memory_space<vmem>>, vector<16x128xbf16>
    %cst = arith.constant dense<0.000000e+00> : vector<16x128xf32>
    %11 = tpu.matmul %10, %9, %cst {dimension_numbers = #tpu.dot_dimension_numbers<[1], [0], [0], [1], [0, 0, 1, 1], [], []>} : vector<16x128xbf16>, vector<128x128xbf16>, vector<16x128xf32> -> vector<16x128xf32>
    %12 = arith.index_cast %c0_i32_5 : i32 to index
    %c0_8 = arith.constant 0 : index
    %c0_9 = arith.constant 0 : index
    %13 = vector.load %arg2[%12, %c0_8, %c0_9] : memref<8x16x128xf32, #tpu.memory_space<vmem>>, vector<1x16x128xf32>
    %14 = vector.shape_cast %13 : vector<1x16x128xf32> to vector<16x128xf32>
    %15 = arith.addf %14, %11 : vector<16x128xf32>
    %c0_10 = arith.constant 0 : index
    %c0_11 = arith.constant 0 : index
    %16 = vector.load %arg9[%c0_10, %c0_11] : memref<16x128xf32, #tpu.memory_space<vmem>>, vector<16x128xf32>
    %17 = arith.mulf %16, %5 : vector<16x128xf32>
    %18 = arith.mulf %8, %15 : vector<16x128xf32>
    %19 = arith.addf %17, %18 : vector<16x128xf32>
    %20 = arith.extf %10 : vector<16x128xbf16> to vector<16x128xf32>
    %cst_12 = arith.constant 1.000000e+00 : f32
    %21 = vector.broadcast %cst_12 : f32 to vector<16x128xf32>
    %22 = arith.mulf %21, %20 : vector<16x128xf32>
    %23 = arith.subf %19, %22 : vector<16x128xf32>
    %cst_13 = arith.constant 1.000000e+00 : f32
    %24 = vector.broadcast %cst_13 : f32 to vector<16x128xf32>
    %25 = arith.cmpf ogt, %23, %24 : vector<16x128xf32>
    %c0_14 = arith.constant 0 : index
    %c0_15 = arith.constant 0 : index
    %26 = vector.load %arg9[%c0_14, %c0_15] : memref<16x128xf32, #tpu.memory_space<vmem>>, vector<16x128xf32>
    tpu.vector_store %arg9[%c0_14, %c0_15], %23 {strides = array<i32>} : memref<16x128xf32, #tpu.memory_space<vmem>>, vector<16x128xf32>,
    %27 = arith.extui %25 : vector<16x128xi1> to vector<16x128xi32>
    %28 = arith.sitofp %27 : vector<16x128xi32> to vector<16x128xf32>
    %29 = arith.truncf %28 : vector<16x128xf32> to vector<16x128xbf16>
    %c0_16 = arith.constant 0 : index
    %c0_17 = arith.constant 0 : index
    %30 = vector.load %arg10[%c0_16, %c0_17] : memref<16x128xbf16, #tpu.memory_space<vmem>>, vector<16x128xbf16>
    tpu.vector_store %arg10[%c0_16, %c0_17], %29 {strides = array<i32>} : memref<16x128xbf16, #tpu.memory_space<vmem>>, vector<16x128xbf16>,
    %31 = arith.index_cast %c0_i32_5 : i32 to index
    %c0_18 = arith.constant 0 : index
    %c0_19 = arith.constant 0 : index
    %32 = vector.load %arg7[%31, %c0_18, %c0_19] : memref<8x16x128xf32, #tpu.memory_space<vmem>>, vector<1x16x128xf32>
    %33 = vector.shape_cast %32 : vector<1x16x128xf32> to vector<16x128xf32>
    %34 = vector.shape_cast %23 : vector<16x128xf32> to vector<1x16x128xf32>
    tpu.vector_store %arg7[%31, %c0_18, %c0_19], %34 {strides = array<i32>} : memref<8x16x128xf32, #tpu.memory_space<vmem>>, vector<1x16x128xf32>,
    %35 = arith.extui %25 : vector<16x128xi1> to vector<16x128xi32>
    %36 = arith.sitofp %35 : vector<16x128xi32> to vector<16x128xf32>
    %37 = arith.truncf %36 : vector<16x128xf32> to vector<16x128xbf16>
    %38 = arith.index_cast %c0_i32_5 : i32 to index
    %c0_20 = arith.constant 0 : index
    %c0_21 = arith.constant 0 : index
    %39 = vector.load %arg8[%38, %c0_20, %c0_21] : memref<8x16x128xbf16, #tpu.memory_space<vmem>>, vector<1x16x128xbf16>
    %40 = vector.shape_cast %39 : vector<1x16x128xbf16> to vector<16x128xbf16>
    %41 = vector.shape_cast %37 : vector<16x128xbf16> to vector<1x16x128xbf16>
    tpu.vector_store %arg8[%38, %c0_20, %c0_21], %41 {strides = array<i32>} : memref<8x16x128xbf16, #tpu.memory_space<vmem>>, vector<1x16x128xbf16>,
    %c1_i32 = arith.constant 1 : i32
    %c0_22 = arith.constant 0 : index
    %c0_23 = arith.constant 0 : index
    %42 = vector.load %arg10[%c0_22, %c0_23] : memref<16x128xbf16, #tpu.memory_space<vmem>>, vector<16x128xbf16>
    %cst_24 = arith.constant dense<0.000000e+00> : vector<16x128xf32>
    %43 = tpu.matmul %42, %9, %cst_24 {dimension_numbers = #tpu.dot_dimension_numbers<[1], [0], [0], [1], [0, 0, 1, 1], [], []>} : vector<16x128xbf16>, vector<128x128xbf16>, vector<16x128xf32> -> vector<16x128xf32>
    %44 = arith.index_cast %c1_i32 : i32 to index
    %c0_25 = arith.constant 0 : index
    %c0_26 = arith.constant 0 : index
    %45 = vector.load %arg2[%44, %c0_25, %c0_26] : memref<8x16x128xf32, #tpu.memory_space<vmem>>, vector<1x16x128xf32>
    %46 = vector.shape_cast %45 : vector<1x16x128xf32> to vector<16x128xf32>
    %47 = arith.addf %46, %43 : vector<16x128xf32>
    %c0_27 = arith.constant 0 : index
    %c0_28 = arith.constant 0 : index
    %48 = vector.load %arg9[%c0_27, %c0_28] : memref<16x128xf32, #tpu.memory_space<vmem>>, vector<16x128xf32>
    %49 = arith.mulf %48, %5 : vector<16x128xf32>
    %50 = arith.mulf %8, %47 : vector<16x128xf32>
    %51 = arith.addf %49, %50 : vector<16x128xf32>
    %52 = arith.extf %42 : vector<16x128xbf16> to vector<16x128xf32>
    %cst_29 = arith.constant 1.000000e+00 : f32
    %53 = vector.broadcast %cst_29 : f32 to vector<16x128xf32>
    %54 = arith.mulf %53, %52 : vector<16x128xf32>
    %55 = arith.subf %51, %54 : vector<16x128xf32>
    %cst_30 = arith.constant 1.000000e+00 : f32
    %56 = vector.broadcast %cst_30 : f32 to vector<16x128xf32>
    %57 = arith.cmpf ogt, %55, %56 : vector<16x128xf32>
    %c0_31 = arith.constant 0 : index
    %c0_32 = arith.constant 0 : index
    %58 = vector.load %arg9[%c0_31, %c0_32] : memref<16x128xf32, #tpu.memory_space<vmem>>, vector<16x128xf32>
    tpu.vector_store %arg9[%c0_31, %c0_32], %55 {strides = array<i32>} : memref<16x128xf32, #tpu.memory_space<vmem>>, vector<16x128xf32>,
    %59 = arith.extui %57 : vector<16x128xi1> to vector<16x128xi32>
    %60 = arith.sitofp %59 : vector<16x128xi32> to vector<16x128xf32>
    %61 = arith.truncf %60 : vector<16x128xf32> to vector<16x128xbf16>
    %c0_33 = arith.constant 0 : index
    %c0_34 = arith.constant 0 : index
    %62 = vector.load %arg10[%c0_33, %c0_34] : memref<16x128xbf16, #tpu.memory_space<vmem>>, vector<16x128xbf16>
    tpu.vector_store %arg10[%c0_33, %c0_34], %61 {strides = array<i32>} : memref<16x128xbf16, #tpu.memory_space<vmem>>, vector<16x128xbf16>,
    %63 = arith.index_cast %c1_i32 : i32 to index
    %c0_35 = arith.constant 0 : index
    %c0_36 = arith.constant 0 : index
    %64 = vector.load %arg7[%63, %c0_35, %c0_36] : memref<8x16x128xf32, #tpu.memory_space<vmem>>, vector<1x16x128xf32>
    %65 = vector.shape_cast %64 : vector<1x16x128xf32> to vector<16x128xf32>
    %66 = vector.shape_cast %55 : vector<16x128xf32> to vector<1x16x128xf32>
    tpu.vector_store %arg7[%63, %c0_35, %c0_36], %66 {strides = array<i32>} : memref<8x16x128xf32, #tpu.memory_space<vmem>>, vector<1x16x128xf32>,
    %67 = arith.extui %57 : vector<16x128xi1> to vector<16x128xi32>
    %68 = arith.sitofp %67 : vector<16x128xi32> to vector<16x128xf32>
    %69 = arith.truncf %68 : vector<16x128xf32> to vector<16x128xbf16>
    %70 = arith.index_cast %c1_i32 : i32 to index
    %c0_37 = arith.constant 0 : index
    %c0_38 = arith.constant 0 : index
    %71 = vector.load %arg8[%70, %c0_37, %c0_38] : memref<8x16x128xbf16, #tpu.memory_space<vmem>>, vector<1x16x128xbf16>
    %72 = vector.shape_cast %71 : vector<1x16x128xbf16> to vector<16x128xbf16>
    %73 = vector.shape_cast %69 : vector<16x128xbf16> to vector<1x16x128xbf16>
    tpu.vector_store %arg8[%70, %c0_37, %c0_38], %73 {strides = array<i32>} : memref<8x16x128xbf16, #tpu.memory_space<vmem>>, vector<1x16x128xbf16>,
    %c2_i32 = arith.constant 2 : i32
    %c0_39 = arith.constant 0 : index
    %c0_40 = arith.constant 0 : index
    %74 = vector.load %arg10[%c0_39, %c0_40] : memref<16x128xbf16, #tpu.memory_space<vmem>>, vector<16x128xbf16>
    %cst_41 = arith.constant dense<0.000000e+00> : vector<16x128xf32>
    %75 = tpu.matmul %74, %9, %cst_41 {dimension_numbers = #tpu.dot_dimension_numbers<[1], [0], [0], [1], [0, 0, 1, 1], [], []>} : vector<16x128xbf16>, vector<128x128xbf16>, vector<16x128xf32> -> vector<16x128xf32>
    %76 = arith.index_cast %c2_i32 : i32 to index
    %c0_42 = arith.constant 0 : index
    %c0_43 = arith.constant 0 : index
    %77 = vector.load %arg2[%76, %c0_42, %c0_43] : memref<8x16x128xf32, #tpu.memory_space<vmem>>, vector<1x16x128xf32>
    %78 = vector.shape_cast %77 : vector<1x16x128xf32> to vector<16x128xf32>
    %79 = arith.addf %78, %75 : vector<16x128xf32>
    %c0_44 = arith.constant 0 : index
    %c0_45 = arith.constant 0 : index
    %80 = vector.load %arg9[%c0_44, %c0_45] : memref<16x128xf32, #tpu.memory_space<vmem>>, vector<16x128xf32>
    %81 = arith.mulf %80, %5 : vector<16x128xf32>
    %82 = arith.mulf %8, %79 : vector<16x128xf32>
    %83 = arith.addf %81, %82 : vector<16x128xf32>
    %84 = arith.extf %74 : vector<16x128xbf16> to vector<16x128xf32>
    %cst_46 = arith.constant 1.000000e+00 : f32
    %85 = vector.broadcast %cst_46 : f32 to vector<16x128xf32>
    %86 = arith.mulf %85, %84 : vector<16x128xf32>
    %87 = arith.subf %83, %86 : vector<16x128xf32>
    %cst_47 = arith.constant 1.000000e+00 : f32
    %88 = vector.broadcast %cst_47 : f32 to vector<16x128xf32>
    %89 = arith.cmpf ogt, %87, %88 : vector<16x128xf32>
    %c0_48 = arith.constant 0 : index
    %c0_49 = arith.constant 0 : index
    %90 = vector.load %arg9[%c0_48, %c0_49] : memref<16x128xf32, #tpu.memory_space<vmem>>, vector<16x128xf32>
    tpu.vector_store %arg9[%c0_48, %c0_49], %87 {strides = array<i32>} : memref<16x128xf32, #tpu.memory_space<vmem>>, vector<16x128xf32>,
    %91 = arith.extui %89 : vector<16x128xi1> to vector<16x128xi32>
    %92 = arith.sitofp %91 : vector<16x128xi32> to vector<16x128xf32>
    %93 = arith.truncf %92 : vector<16x128xf32> to vector<16x128xbf16>
    %c0_50 = arith.constant 0 : index
    %c0_51 = arith.constant 0 : index
    %94 = vector.load %arg10[%c0_50, %c0_51] : memref<16x128xbf16, #tpu.memory_space<vmem>>, vector<16x128xbf16>
    tpu.vector_store %arg10[%c0_50, %c0_51], %93 {strides = array<i32>} : memref<16x128xbf16, #tpu.memory_space<vmem>>, vector<16x128xbf16>,
    %95 = arith.index_cast %c2_i32 : i32 to index
    %c0_52 = arith.constant 0 : index
    %c0_53 = arith.constant 0 : index
    %96 = vector.load %arg7[%95, %c0_52, %c0_53] : memref<8x16x128xf32, #tpu.memory_space<vmem>>, vector<1x16x128xf32>
    %97 = vector.shape_cast %96 : vector<1x16x128xf32> to vector<16x128xf32>
    %98 = vector.shape_cast %87 : vector<16x128xf32> to vector<1x16x128xf32>
    tpu.vector_store %arg7[%95, %c0_52, %c0_53], %98 {strides = array<i32>} : memref<8x16x128xf32, #tpu.memory_space<vmem>>, vector<1x16x128xf32>,
    %99 = arith.extui %89 : vector<16x128xi1> to vector<16x128xi32>
    %100 = arith.sitofp %99 : vector<16x128xi32> to vector<16x128xf32>
    %101 = arith.truncf %100 : vector<16x128xf32> to vector<16x128xbf16>
    %102 = arith.index_cast %c2_i32 : i32 to index
    %c0_54 = arith.constant 0 : index
    %c0_55 = arith.constant 0 : index
    %103 = vector.load %arg8[%102, %c0_54, %c0_55] : memref<8x16x128xbf16, #tpu.memory_space<vmem>>, vector<1x16x128xbf16>
    %104 = vector.shape_cast %103 : vector<1x16x128xbf16> to vector<16x128xbf16>
    %105 = vector.shape_cast %101 : vector<16x128xbf16> to vector<1x16x128xbf16>
    tpu.vector_store %arg8[%102, %c0_54, %c0_55], %105 {strides = array<i32>} : memref<8x16x128xbf16, #tpu.memory_space<vmem>>, vector<1x16x128xbf16>,
    %c3_i32 = arith.constant 3 : i32
    %c0_56 = arith.constant 0 : index
    %c0_57 = arith.constant 0 : index
    %106 = vector.load %arg10[%c0_56, %c0_57] : memref<16x128xbf16, #tpu.memory_space<vmem>>, vector<16x128xbf16>
    %cst_58 = arith.constant dense<0.000000e+00> : vector<16x128xf32>
    %107 = tpu.matmul %106, %9, %cst_58 {dimension_numbers = #tpu.dot_dimension_numbers<[1], [0], [0], [1], [0, 0, 1, 1], [], []>} : vector<16x128xbf16>, vector<128x128xbf16>, vector<16x128xf32> -> vector<16x128xf32>
    %108 = arith.index_cast %c3_i32 : i32 to index
    %c0_59 = arith.constant 0 : index
    %c0_60 = arith.constant 0 : index
    %109 = vector.load %arg2[%108, %c0_59, %c0_60] : memref<8x16x128xf32, #tpu.memory_space<vmem>>, vector<1x16x128xf32>
    %110 = vector.shape_cast %109 : vector<1x16x128xf32> to vector<16x128xf32>
    %111 = arith.addf %110, %107 : vector<16x128xf32>
    %c0_61 = arith.constant 0 : index
    %c0_62 = arith.constant 0 : index
    %112 = vector.load %arg9[%c0_61, %c0_62] : memref<16x128xf32, #tpu.memory_space<vmem>>, vector<16x128xf32>
    %113 = arith.mulf %112, %5 : vector<16x128xf32>
    %114 = arith.mulf %8, %111 : vector<16x128xf32>
    %115 = arith.addf %113, %114 : vector<16x128xf32>
    %116 = arith.extf %106 : vector<16x128xbf16> to vector<16x128xf32>
    %cst_63 = arith.constant 1.000000e+00 : f32
    %117 = vector.broadcast %cst_63 : f32 to vector<16x128xf32>
    %118 = arith.mulf %117, %116 : vector<16x128xf32>
    %119 = arith.subf %115, %118 : vector<16x128xf32>
    %cst_64 = arith.constant 1.000000e+00 : f32
    %120 = vector.broadcast %cst_64 : f32 to vector<16x128xf32>
    %121 = arith.cmpf ogt, %119, %120 : vector<16x128xf32>
    %c0_65 = arith.constant 0 : index
    %c0_66 = arith.constant 0 : index
    %122 = vector.load %arg9[%c0_65, %c0_66] : memref<16x128xf32, #tpu.memory_space<vmem>>, vector<16x128xf32>
    tpu.vector_store %arg9[%c0_65, %c0_66], %119 {strides = array<i32>} : memref<16x128xf32, #tpu.memory_space<vmem>>, vector<16x128xf32>,
    %123 = arith.extui %121 : vector<16x128xi1> to vector<16x128xi32>
    %124 = arith.sitofp %123 : vector<16x128xi32> to vector<16x128xf32>
    %125 = arith.truncf %124 : vector<16x128xf32> to vector<16x128xbf16>
    %c0_67 = arith.constant 0 : index
    %c0_68 = arith.constant 0 : index
    %126 = vector.load %arg10[%c0_67, %c0_68] : memref<16x128xbf16, #tpu.memory_space<vmem>>, vector<16x128xbf16>
    tpu.vector_store %arg10[%c0_67, %c0_68], %125 {strides = array<i32>} : memref<16x128xbf16, #tpu.memory_space<vmem>>, vector<16x128xbf16>,
    %127 = arith.index_cast %c3_i32 : i32 to index
    %c0_69 = arith.constant 0 : index
    %c0_70 = arith.constant 0 : index
    %128 = vector.load %arg7[%127, %c0_69, %c0_70] : memref<8x16x128xf32, #tpu.memory_space<vmem>>, vector<1x16x128xf32>
    %129 = vector.shape_cast %128 : vector<1x16x128xf32> to vector<16x128xf32>
    %130 = vector.shape_cast %119 : vector<16x128xf32> to vector<1x16x128xf32>
    tpu.vector_store %arg7[%127, %c0_69, %c0_70], %130 {strides = array<i32>} : memref<8x16x128xf32, #tpu.memory_space<vmem>>, vector<1x16x128xf32>,
    %131 = arith.extui %121 : vector<16x128xi1> to vector<16x128xi32>
    %132 = arith.sitofp %131 : vector<16x128xi32> to vector<16x128xf32>
    %133 = arith.truncf %132 : vector<16x128xf32> to vector<16x128xbf16>
    %134 = arith.index_cast %c3_i32 : i32 to index
    %c0_71 = arith.constant 0 : index
    %c0_72 = arith.constant 0 : index
    %135 = vector.load %arg8[%134, %c0_71, %c0_72] : memref<8x16x128xbf16, #tpu.memory_space<vmem>>, vector<1x16x128xbf16>
    %136 = vector.shape_cast %135 : vector<1x16x128xbf16> to vector<16x128xbf16>
    %137 = vector.shape_cast %133 : vector<16x128xbf16> to vector<1x16x128xbf16>
    tpu.vector_store %arg8[%134, %c0_71, %c0_72], %137 {strides = array<i32>} : memref<8x16x128xbf16, #tpu.memory_space<vmem>>, vector<1x16x128xbf16>,
    %c4_i32 = arith.constant 4 : i32
    %c0_73 = arith.constant 0 : index
    %c0_74 = arith.constant 0 : index
    %138 = vector.load %arg10[%c0_73, %c0_74] : memref<16x128xbf16, #tpu.memory_space<vmem>>, vector<16x128xbf16>
    %cst_75 = arith.constant dense<0.000000e+00> : vector<16x128xf32>
    %139 = tpu.matmul %138, %9, %cst_75 {dimension_numbers = #tpu.dot_dimension_numbers<[1], [0], [0], [1], [0, 0, 1, 1], [], []>} : vector<16x128xbf16>, vector<128x128xbf16>, vector<16x128xf32> -> vector<16x128xf32>
    %140 = arith.index_cast %c4_i32 : i32 to index
    %c0_76 = arith.constant 0 : index
    %c0_77 = arith.constant 0 : index
    %141 = vector.load %arg2[%140, %c0_76, %c0_77] : memref<8x16x128xf32, #tpu.memory_space<vmem>>, vector<1x16x128xf32>
    %142 = vector.shape_cast %141 : vector<1x16x128xf32> to vector<16x128xf32>
    %143 = arith.addf %142, %139 : vector<16x128xf32>
    %c0_78 = arith.constant 0 : index
    %c0_79 = arith.constant 0 : index
    %144 = vector.load %arg9[%c0_78, %c0_79] : memref<16x128xf32, #tpu.memory_space<vmem>>, vector<16x128xf32>
    %145 = arith.mulf %144, %5 : vector<16x128xf32>
    %146 = arith.mulf %8, %143 : vector<16x128xf32>
    %147 = arith.addf %145, %146 : vector<16x128xf32>
    %148 = arith.extf %138 : vector<16x128xbf16> to vector<16x128xf32>
    %cst_80 = arith.constant 1.000000e+00 : f32
    %149 = vector.broadcast %cst_80 : f32 to vector<16x128xf32>
    %150 = arith.mulf %149, %148 : vector<16x128xf32>
    %151 = arith.subf %147, %150 : vector<16x128xf32>
    %cst_81 = arith.constant 1.000000e+00 : f32
    %152 = vector.broadcast %cst_81 : f32 to vector<16x128xf32>
    %153 = arith.cmpf ogt, %151, %152 : vector<16x128xf32>
    %c0_82 = arith.constant 0 : index
    %c0_83 = arith.constant 0 : index
    %154 = vector.load %arg9[%c0_82, %c0_83] : memref<16x128xf32, #tpu.memory_space<vmem>>, vector<16x128xf32>
    tpu.vector_store %arg9[%c0_82, %c0_83], %151 {strides = array<i32>} : memref<16x128xf32, #tpu.memory_space<vmem>>, vector<16x128xf32>,
    %155 = arith.extui %153 : vector<16x128xi1> to vector<16x128xi32>
    %156 = arith.sitofp %155 : vector<16x128xi32> to vector<16x128xf32>
    %157 = arith.truncf %156 : vector<16x128xf32> to vector<16x128xbf16>
    %c0_84 = arith.constant 0 : index
    %c0_85 = arith.constant 0 : index
    %158 = vector.load %arg10[%c0_84, %c0_85] : memref<16x128xbf16, #tpu.memory_space<vmem>>, vector<16x128xbf16>
    tpu.vector_store %arg10[%c0_84, %c0_85], %157 {strides = array<i32>} : memref<16x128xbf16, #tpu.memory_space<vmem>>, vector<16x128xbf16>,
    %159 = arith.index_cast %c4_i32 : i32 to index
    %c0_86 = arith.constant 0 : index
    %c0_87 = arith.constant 0 : index
    %160 = vector.load %arg7[%159, %c0_86, %c0_87] : memref<8x16x128xf32, #tpu.memory_space<vmem>>, vector<1x16x128xf32>
    %161 = vector.shape_cast %160 : vector<1x16x128xf32> to vector<16x128xf32>
    %162 = vector.shape_cast %151 : vector<16x128xf32> to vector<1x16x128xf32>
    tpu.vector_store %arg7[%159, %c0_86, %c0_87], %162 {strides = array<i32>} : memref<8x16x128xf32, #tpu.memory_space<vmem>>, vector<1x16x128xf32>,
    %163 = arith.extui %153 : vector<16x128xi1> to vector<16x128xi32>
    %164 = arith.sitofp %163 : vector<16x128xi32> to vector<16x128xf32>
    %165 = arith.truncf %164 : vector<16x128xf32> to vector<16x128xbf16>
    %166 = arith.index_cast %c4_i32 : i32 to index
    %c0_88 = arith.constant 0 : index
    %c0_89 = arith.constant 0 : index
    %167 = vector.load %arg8[%166, %c0_88, %c0_89] : memref<8x16x128xbf16, #tpu.memory_space<vmem>>, vector<1x16x128xbf16>
    %168 = vector.shape_cast %167 : vector<1x16x128xbf16> to vector<16x128xbf16>
    %169 = vector.shape_cast %165 : vector<16x128xbf16> to vector<1x16x128xbf16>
    tpu.vector_store %arg8[%166, %c0_88, %c0_89], %169 {strides = array<i32>} : memref<8x16x128xbf16, #tpu.memory_space<vmem>>, vector<1x16x128xbf16>,
    %c5_i32 = arith.constant 5 : i32
    %c0_90 = arith.constant 0 : index
    %c0_91 = arith.constant 0 : index
    %170 = vector.load %arg10[%c0_90, %c0_91] : memref<16x128xbf16, #tpu.memory_space<vmem>>, vector<16x128xbf16>
    %cst_92 = arith.constant dense<0.000000e+00> : vector<16x128xf32>
    %171 = tpu.matmul %170, %9, %cst_92 {dimension_numbers = #tpu.dot_dimension_numbers<[1], [0], [0], [1], [0, 0, 1, 1], [], []>} : vector<16x128xbf16>, vector<128x128xbf16>, vector<16x128xf32> -> vector<16x128xf32>
    %172 = arith.index_cast %c5_i32 : i32 to index
    %c0_93 = arith.constant 0 : index
    %c0_94 = arith.constant 0 : index
    %173 = vector.load %arg2[%172, %c0_93, %c0_94] : memref<8x16x128xf32, #tpu.memory_space<vmem>>, vector<1x16x128xf32>
    %174 = vector.shape_cast %173 : vector<1x16x128xf32> to vector<16x128xf32>
    %175 = arith.addf %174, %171 : vector<16x128xf32>
    %c0_95 = arith.constant 0 : index
    %c0_96 = arith.constant 0 : index
    %176 = vector.load %arg9[%c0_95, %c0_96] : memref<16x128xf32, #tpu.memory_space<vmem>>, vector<16x128xf32>
    %177 = arith.mulf %176, %5 : vector<16x128xf32>
    %178 = arith.mulf %8, %175 : vector<16x128xf32>
    %179 = arith.addf %177, %178 : vector<16x128xf32>
    %180 = arith.extf %170 : vector<16x128xbf16> to vector<16x128xf32>
    %cst_97 = arith.constant 1.000000e+00 : f32
    %181 = vector.broadcast %cst_97 : f32 to vector<16x128xf32>
    %182 = arith.mulf %181, %180 : vector<16x128xf32>
    %183 = arith.subf %179, %182 : vector<16x128xf32>
    %cst_98 = arith.constant 1.000000e+00 : f32
    %184 = vector.broadcast %cst_98 : f32 to vector<16x128xf32>
    %185 = arith.cmpf ogt, %183, %184 : vector<16x128xf32>
    %c0_99 = arith.constant 0 : index
    %c0_100 = arith.constant 0 : index
    %186 = vector.load %arg9[%c0_99, %c0_100] : memref<16x128xf32, #tpu.memory_space<vmem>>, vector<16x128xf32>
    tpu.vector_store %arg9[%c0_99, %c0_100], %183 {strides = array<i32>} : memref<16x128xf32, #tpu.memory_space<vmem>>, vector<16x128xf32>,
    %187 = arith.extui %185 : vector<16x128xi1> to vector<16x128xi32>
    %188 = arith.sitofp %187 : vector<16x128xi32> to vector<16x128xf32>
    %189 = arith.truncf %188 : vector<16x128xf32> to vector<16x128xbf16>
    %c0_101 = arith.constant 0 : index
    %c0_102 = arith.constant 0 : index
    %190 = vector.load %arg10[%c0_101, %c0_102] : memref<16x128xbf16, #tpu.memory_space<vmem>>, vector<16x128xbf16>
    tpu.vector_store %arg10[%c0_101, %c0_102], %189 {strides = array<i32>} : memref<16x128xbf16, #tpu.memory_space<vmem>>, vector<16x128xbf16>,
    %191 = arith.index_cast %c5_i32 : i32 to index
    %c0_103 = arith.constant 0 : index
    %c0_104 = arith.constant 0 : index
    %192 = vector.load %arg7[%191, %c0_103, %c0_104] : memref<8x16x128xf32, #tpu.memory_space<vmem>>, vector<1x16x128xf32>
    %193 = vector.shape_cast %192 : vector<1x16x128xf32> to vector<16x128xf32>
    %194 = vector.shape_cast %183 : vector<16x128xf32> to vector<1x16x128xf32>
    tpu.vector_store %arg7[%191, %c0_103, %c0_104], %194 {strides = array<i32>} : memref<8x16x128xf32, #tpu.memory_space<vmem>>, vector<1x16x128xf32>,
    %195 = arith.extui %185 : vector<16x128xi1> to vector<16x128xi32>
    %196 = arith.sitofp %195 : vector<16x128xi32> to vector<16x128xf32>
    %197 = arith.truncf %196 : vector<16x128xf32> to vector<16x128xbf16>
    %198 = arith.index_cast %c5_i32 : i32 to index
    %c0_105 = arith.constant 0 : index
    %c0_106 = arith.constant 0 : index
    %199 = vector.load %arg8[%198, %c0_105, %c0_106] : memref<8x16x128xbf16, #tpu.memory_space<vmem>>, vector<1x16x128xbf16>
    %200 = vector.shape_cast %199 : vector<1x16x128xbf16> to vector<16x128xbf16>
    %201 = vector.shape_cast %197 : vector<16x128xbf16> to vector<1x16x128xbf16>
    tpu.vector_store %arg8[%198, %c0_105, %c0_106], %201 {strides = array<i32>} : memref<8x16x128xbf16, #tpu.memory_space<vmem>>, vector<1x16x128xbf16>,
    %c6_i32 = arith.constant 6 : i32
    %c0_107 = arith.constant 0 : index
    %c0_108 = arith.constant 0 : index
    %202 = vector.load %arg10[%c0_107, %c0_108] : memref<16x128xbf16, #tpu.memory_space<vmem>>, vector<16x128xbf16>
    %cst_109 = arith.constant dense<0.000000e+00> : vector<16x128xf32>
    %203 = tpu.matmul %202, %9, %cst_109 {dimension_numbers = #tpu.dot_dimension_numbers<[1], [0], [0], [1], [0, 0, 1, 1], [], []>} : vector<16x128xbf16>, vector<128x128xbf16>, vector<16x128xf32> -> vector<16x128xf32>
    %204 = arith.index_cast %c6_i32 : i32 to index
    %c0_110 = arith.constant 0 : index
    %c0_111 = arith.constant 0 : index
    %205 = vector.load %arg2[%204, %c0_110, %c0_111] : memref<8x16x128xf32, #tpu.memory_space<vmem>>, vector<1x16x128xf32>
    %206 = vector.shape_cast %205 : vector<1x16x128xf32> to vector<16x128xf32>
    %207 = arith.addf %206, %203 : vector<16x128xf32>
    %c0_112 = arith.constant 0 : index
    %c0_113 = arith.constant 0 : index
    %208 = vector.load %arg9[%c0_112, %c0_113] : memref<16x128xf32, #tpu.memory_space<vmem>>, vector<16x128xf32>
    %209 = arith.mulf %208, %5 : vector<16x128xf32>
    %210 = arith.mulf %8, %207 : vector<16x128xf32>
    %211 = arith.addf %209, %210 : vector<16x128xf32>
    %212 = arith.extf %202 : vector<16x128xbf16> to vector<16x128xf32>
    %cst_114 = arith.constant 1.000000e+00 : f32
    %213 = vector.broadcast %cst_114 : f32 to vector<16x128xf32>
    %214 = arith.mulf %213, %212 : vector<16x128xf32>
    %215 = arith.subf %211, %214 : vector<16x128xf32>
    %cst_115 = arith.constant 1.000000e+00 : f32
    %216 = vector.broadcast %cst_115 : f32 to vector<16x128xf32>
    %217 = arith.cmpf ogt, %215, %216 : vector<16x128xf32>
    %c0_116 = arith.constant 0 : index
    %c0_117 = arith.constant 0 : index
    %218 = vector.load %arg9[%c0_116, %c0_117] : memref<16x128xf32, #tpu.memory_space<vmem>>, vector<16x128xf32>
    tpu.vector_store %arg9[%c0_116, %c0_117], %215 {strides = array<i32>} : memref<16x128xf32, #tpu.memory_space<vmem>>, vector<16x128xf32>,
    %219 = arith.extui %217 : vector<16x128xi1> to vector<16x128xi32>
    %220 = arith.sitofp %219 : vector<16x128xi32> to vector<16x128xf32>
    %221 = arith.truncf %220 : vector<16x128xf32> to vector<16x128xbf16>
    %c0_118 = arith.constant 0 : index
    %c0_119 = arith.constant 0 : index
    %222 = vector.load %arg10[%c0_118, %c0_119] : memref<16x128xbf16, #tpu.memory_space<vmem>>, vector<16x128xbf16>
    tpu.vector_store %arg10[%c0_118, %c0_119], %221 {strides = array<i32>} : memref<16x128xbf16, #tpu.memory_space<vmem>>, vector<16x128xbf16>,
    %223 = arith.index_cast %c6_i32 : i32 to index
    %c0_120 = arith.constant 0 : index
    %c0_121 = arith.constant 0 : index
    %224 = vector.load %arg7[%223, %c0_120, %c0_121] : memref<8x16x128xf32, #tpu.memory_space<vmem>>, vector<1x16x128xf32>
    %225 = vector.shape_cast %224 : vector<1x16x128xf32> to vector<16x128xf32>
    %226 = vector.shape_cast %215 : vector<16x128xf32> to vector<1x16x128xf32>
    tpu.vector_store %arg7[%223, %c0_120, %c0_121], %226 {strides = array<i32>} : memref<8x16x128xf32, #tpu.memory_space<vmem>>, vector<1x16x128xf32>,
    %227 = arith.extui %217 : vector<16x128xi1> to vector<16x128xi32>
    %228 = arith.sitofp %227 : vector<16x128xi32> to vector<16x128xf32>
    %229 = arith.truncf %228 : vector<16x128xf32> to vector<16x128xbf16>
    %230 = arith.index_cast %c6_i32 : i32 to index
    %c0_122 = arith.constant 0 : index
    %c0_123 = arith.constant 0 : index
    %231 = vector.load %arg8[%230, %c0_122, %c0_123] : memref<8x16x128xbf16, #tpu.memory_space<vmem>>, vector<1x16x128xbf16>
    %232 = vector.shape_cast %231 : vector<1x16x128xbf16> to vector<16x128xbf16>
    %233 = vector.shape_cast %229 : vector<16x128xbf16> to vector<1x16x128xbf16>
    tpu.vector_store %arg8[%230, %c0_122, %c0_123], %233 {strides = array<i32>} : memref<8x16x128xbf16, #tpu.memory_space<vmem>>, vector<1x16x128xbf16>,
    %c7_i32 = arith.constant 7 : i32
    %c0_124 = arith.constant 0 : index
    %c0_125 = arith.constant 0 : index
    %234 = vector.load %arg10[%c0_124, %c0_125] : memref<16x128xbf16, #tpu.memory_space<vmem>>, vector<16x128xbf16>
    %cst_126 = arith.constant dense<0.000000e+00> : vector<16x128xf32>
    %235 = tpu.matmul %234, %9, %cst_126 {dimension_numbers = #tpu.dot_dimension_numbers<[1], [0], [0], [1], [0, 0, 1, 1], [], []>} : vector<16x128xbf16>, vector<128x128xbf16>, vector<16x128xf32> -> vector<16x128xf32>
    %236 = arith.index_cast %c7_i32 : i32 to index
    %c0_127 = arith.constant 0 : index
    %c0_128 = arith.constant 0 : index
    %237 = vector.load %arg2[%236, %c0_127, %c0_128] : memref<8x16x128xf32, #tpu.memory_space<vmem>>, vector<1x16x128xf32>
    %238 = vector.shape_cast %237 : vector<1x16x128xf32> to vector<16x128xf32>
    %239 = arith.addf %238, %235 : vector<16x128xf32>
    %c0_129 = arith.constant 0 : index
    %c0_130 = arith.constant 0 : index
    %240 = vector.load %arg9[%c0_129, %c0_130] : memref<16x128xf32, #tpu.memory_space<vmem>>, vector<16x128xf32>
    %241 = arith.mulf %240, %5 : vector<16x128xf32>
    %242 = arith.mulf %8, %239 : vector<16x128xf32>
    %243 = arith.addf %241, %242 : vector<16x128xf32>
    %244 = arith.extf %234 : vector<16x128xbf16> to vector<16x128xf32>
    %cst_131 = arith.constant 1.000000e+00 : f32
    %245 = vector.broadcast %cst_131 : f32 to vector<16x128xf32>
    %246 = arith.mulf %245, %244 : vector<16x128xf32>
    %247 = arith.subf %243, %246 : vector<16x128xf32>
    %cst_132 = arith.constant 1.000000e+00 : f32
    %248 = vector.broadcast %cst_132 : f32 to vector<16x128xf32>
    %249 = arith.cmpf ogt, %247, %248 : vector<16x128xf32>
    %c0_133 = arith.constant 0 : index
    %c0_134 = arith.constant 0 : index
    %250 = vector.load %arg9[%c0_133, %c0_134] : memref<16x128xf32, #tpu.memory_space<vmem>>, vector<16x128xf32>
    tpu.vector_store %arg9[%c0_133, %c0_134], %247 {strides = array<i32>} : memref<16x128xf32, #tpu.memory_space<vmem>>, vector<16x128xf32>,
    %251 = arith.extui %249 : vector<16x128xi1> to vector<16x128xi32>
    %252 = arith.sitofp %251 : vector<16x128xi32> to vector<16x128xf32>
    %253 = arith.truncf %252 : vector<16x128xf32> to vector<16x128xbf16>
    %c0_135 = arith.constant 0 : index
    %c0_136 = arith.constant 0 : index
    %254 = vector.load %arg10[%c0_135, %c0_136] : memref<16x128xbf16, #tpu.memory_space<vmem>>, vector<16x128xbf16>
    tpu.vector_store %arg10[%c0_135, %c0_136], %253 {strides = array<i32>} : memref<16x128xbf16, #tpu.memory_space<vmem>>, vector<16x128xbf16>,
    %255 = arith.index_cast %c7_i32 : i32 to index
    %c0_137 = arith.constant 0 : index
    %c0_138 = arith.constant 0 : index
    %256 = vector.load %arg7[%255, %c0_137, %c0_138] : memref<8x16x128xf32, #tpu.memory_space<vmem>>, vector<1x16x128xf32>
    %257 = vector.shape_cast %256 : vector<1x16x128xf32> to vector<16x128xf32>
    %258 = vector.shape_cast %247 : vector<16x128xf32> to vector<1x16x128xf32>
    tpu.vector_store %arg7[%255, %c0_137, %c0_138], %258 {strides = array<i32>} : memref<8x16x128xf32, #tpu.memory_space<vmem>>, vector<1x16x128xf32>,
    %259 = arith.extui %249 : vector<16x128xi1> to vector<16x128xi32>
    %260 = arith.sitofp %259 : vector<16x128xi32> to vector<16x128xf32>
    %261 = arith.truncf %260 : vector<16x128xf32> to vector<16x128xbf16>
    %262 = arith.index_cast %c7_i32 : i32 to index
    %c0_139 = arith.constant 0 : index
    %c0_140 = arith.constant 0 : index
    %263 = vector.load %arg8[%262, %c0_139, %c0_140] : memref<8x16x128xbf16, #tpu.memory_space<vmem>>, vector<1x16x128xbf16>
    %264 = vector.shape_cast %263 : vector<1x16x128xbf16> to vector<16x128xbf16>
    %265 = vector.shape_cast %261 : vector<16x128xbf16> to vector<1x16x128xbf16>
    tpu.vector_store %arg8[%262, %c0_139, %c0_140], %265 {strides = array<i32>} : memref<8x16x128xbf16, #tpu.memory_space<vmem>>, vector<1x16x128xbf16>,
    %c8_i32 = arith.constant 8 : i32
    return
  }
  func.func @transform_0(%arg0: i32, %arg1: i32) -> (i32, i32, i32) {
    %c0_i32 = arith.constant 0 : i32
    %c0_i32_0 = arith.constant 0 : i32
    return %arg1, %arg0, %c0_i32 : i32, i32, i32
  }
  func.func @transform_1(%arg0: i32, %arg1: i32) -> (i32, i32) {
    %c0_i32 = arith.constant 0 : i32
    %c0_i32_0 = arith.constant 0 : i32
    return %arg0, %c0_i32 : i32, i32
  }
  func.func @transform_2(%arg0: i32, %arg1: i32) -> (i32, i32) {
    %c0_i32 = arith.constant 0 : i32
    %c0_i32_0 = arith.constant 0 : i32
    return %arg0, %c0_i32 : i32, i32
  }
  func.func @transform_3(%arg0: i32, %arg1: i32) -> (i32, i32) {
    %c0_i32 = arith.constant 0 : i32
    %c0_i32_0 = arith.constant 0 : i32
    %c0_i32_1 = arith.constant 0 : i32
    return %c0_i32, %c0_i32_0 : i32, i32
  }
  func.func @transform_4(%arg0: i32, %arg1: i32) -> (i32, i32) {
    %c0_i32 = arith.constant 0 : i32
    %c0_i32_0 = arith.constant 0 : i32
    %c0_i32_1 = arith.constant 0 : i32
    return %c0_i32, %c0_i32_0 : i32, i32
  }
  func.func @transform_5(%arg0: i32, %arg1: i32) -> (i32, i32, i32) {
    %c0_i32 = arith.constant 0 : i32
    %c0_i32_0 = arith.constant 0 : i32
    return %arg1, %arg0, %c0_i32 : i32, i32, i32
  }
  func.func @transform_6(%arg0: i32, %arg1: i32) -> (i32, i32, i32) {
    %c0_i32 = arith.constant 0 : i32
    %c0_i32_0 = arith.constant 0 : i32
    return %arg1, %arg0, %c0_i32 : i32, i32, i32
  }
}

</mosaic_0001>

<llo_original>
// kernel: tpu_custom_call.1
$region0: #{tpu_custom_call.1}
  #allocation0 [shape = 'u32[]', space=smem, size = 0x4, offset = 0x4, fixed_abs, tag = 'smem constant byte address 0x4 - core index']
  #allocation1 [shape = 'u32[144,128]{1,0:T(1,128)}', space=vmem, size = 0x12000, scoped, tag = 'internal scratch']
  #allocation2 [shape = 'f32[16,128]{1,0:T(8,128)}', space=vmem, size = 0x2000, scoped, tag = 'scratch operand']
  #allocation3 [shape = 'bf16[16,128]{1,0:T(16,128)(2,1)}', space=vmem, size = 0x1000, scoped, tag = 'scratch operand']
  %s0 = inlined_call_operand.hbm [shape: f32[8,16,128], index: 0, kind: input, shape index: {}]
  %s1 = inlined_call_operand.hbm [shape: f32[16,128], index: 1, kind: input, shape index: {}]
  %s2 = inlined_call_operand.hbm [shape: f32[16,128], index: 2, kind: input, shape index: {}]
  %s3 = inlined_call_operand.hbm [shape: bf16[128,128], index: 3, kind: input, shape index: {}]
  %s4 = inlined_call_operand.vmem [shape: f32[8,128], index: 4, kind: input, shape index: {}]
  %s5 = inlined_call_operand.hbm [shape: f32[8,16,128], index: 5, kind: output, shape index: {0}]
  %s6 = inlined_call_operand.hbm [shape: bf16[8,16,128], index: 6, kind: output, shape index: {1}]
  %7 = xla_tuple %s5, %s6
  %s8 = sld [smem:[#allocation0]]
  $region58: #{tpu_custom_call.1} parent=0
    _
  %s10 = ssub.s32 1, %s8
  %s11 = scalar_select 0, %s10, %s8
  $region1: #{tpu_custom_call.1} parent=0
    #allocation4 [shape = 'u8[65536]{0}', space=vmem, size = 0x10000, scoped, tag = 'input window, operand 0, single buffered']
    #allocation5 [shape = 's32[1]{0}', space=sflag, size = 0x4, scoped, tag = 'scoped memory for tpu_custom_call.1']
    #allocation6 [shape = 's32[1]{0}', space=sflag, size = 0x4, scoped, tag = 'scoped memory for tpu_custom_call.1']
    #allocation7 [shape = 'u8[8192]{0}', space=vmem, size = 0x2000, scoped, tag = 'input window, operand 1, single buffered']
    #allocation8 [shape = 's32[1]{0}', space=sflag, size = 0x4, scoped, tag = 'scoped memory for tpu_custom_call.1']
    #allocation9 [shape = 'u8[8192]{0}', space=vmem, size = 0x2000, scoped, tag = 'input window, operand 2, single buffered']
    #allocation10 [shape = 'u8[32768]{0}', space=vmem, size = 0x8000, scoped, tag = 'input window, operand 3, single buffered']
    #allocation11 [shape = 's32[1]{0}', space=sflag, size = 0x4, scoped, tag = 'scoped memory for tpu_custom_call.1']
    #allocation12 [shape = 'u8[65536]{0}', space=vmem, size = 0x10000, scoped, tag = 'output window, operand 0, single buffered']
    #allocation13 [shape = 'u8[32768]{0}', space=vmem, size = 0x8000, scoped, tag = 'output window, operand 1, single buffered']
    #allocation14 [shape = 's32[1]{0}', space=sflag, size = 0x4, scoped, tag = 'scoped memory for tpu_custom_call.1']
    %12 = vsyncpa [#allocation5], 0
    %13 = vsyncpa [#allocation8], 0
    %14 = vsyncpa [#allocation11], 0
    %15 = vsyncpa [#allocation6], 0
    %16 = vsyncpa [#allocation14], 0
    // Predicated region
    $region2: #{tpu_custom_call.1} parent=1 // pred_check
      _
    $region3: #{tpu_custom_call.1} parent=1 // pred_check_branch
      %18 = sbr.rel (0) target = $region5
    $region4: #{tpu_custom_call.1} parent=1 // pred_region
      %s20 = ssub.s32 2048, 2048
      %21 = vsyncadd [#allocation5], %s20
      %s22 = sshll.u32 [#allocation4], 4
      %s23 = int_to_ptr.vmem [resolvable:$true] %s22
      %28 = dma.hbm_to_vmem [thread:$0]  %s0, 2048, %s23, [#allocation5], 128, 128, 8
    $region5: #{tpu_custom_call.1} parent=1 // pred_fallthru
      _
    // Predicated region
    $region6: #{tpu_custom_call.1} parent=1 // pred_check
      _
    $region7: #{tpu_custom_call.1} parent=1 // pred_check_branch
      %30 = sbr.rel (0) target = $region9
    $region8: #{tpu_custom_call.1} parent=1 // pred_region
      %s32 = ssub.s32 256, 256
      %33 = vsyncadd [#allocation8], %s32
      %s34 = sshll.u32 [#allocation7], 4
      %s35 = int_to_ptr.vmem [resolvable:$true] %s34
      %40 = dma.hbm_to_vmem [thread:$0]  %s1, 256, %s35, [#allocation8], 128, 128, 8
    $region9: #{tpu_custom_call.1} parent=1 // pred_fallthru
      _
    // Predicated region
    $region10: #{tpu_custom_call.1} parent=1 // pred_check
      _
    $region11: #{tpu_custom_call.1} parent=1 // pred_check_branch
      %42 = sbr.rel (0) target = $region13
    $region12: #{tpu_custom_call.1} parent=1 // pred_region
      %s44 = ssub.s32 256, 256
      %45 = vsyncadd [#allocation8], %s44
      %s46 = sshll.u32 [#allocation9], 4
      %s47 = int_to_ptr.vmem [resolvable:$true] %s46
      %52 = dma.hbm_to_vmem [thread:$0]  %s2, 256, %s47, [#allocation8], 128, 128, 8
    $region13: #{tpu_custom_call.1} parent=1 // pred_fallthru
      _
    // Predicated region
    $region14: #{tpu_custom_call.1} parent=1 // pred_check
      _
    $region15: #{tpu_custom_call.1} parent=1 // pred_check_branch
      %54 = sbr.rel (0) target = $region17
    $region16: #{tpu_custom_call.1} parent=1 // pred_region
      %s56 = ssub.s32 1024, 1024
      %57 = vsyncadd [#allocation11], %s56
      %s58 = sshll.u32 [#allocation10], 4
      %s59 = int_to_ptr.vmem [resolvable:$true] %s58
      %64 = dma.hbm_to_vmem [thread:$0]  %s3, 1024, %s59, [#allocation11], 64, 64, 4
    $region17: #{tpu_custom_call.1} parent=1 // pred_fallthru
      _
    // Predicated region
    $region18: #{tpu_custom_call.1} parent=1 // pred_check
      _
    $region19: #{tpu_custom_call.1} parent=1 // pred_check_branch
      %66 = sbr.rel (0) target = $region21
    $region20: #{tpu_custom_call.1} parent=1 // pred_region
      _
    $region21: #{tpu_custom_call.1} parent=1 // pred_fallthru
      _
    // Predicated region
    $region22: #{tpu_custom_call.1} parent=1 // pred_check
      _
    $region23: #{tpu_custom_call.1} parent=1 // pred_check_branch
      %68 = sbr.rel (0) target = $region25
    $region24: #{tpu_custom_call.1} parent=1 // pred_region
      %69 = dma.done [#allocation5], 2048
    $region25: #{tpu_custom_call.1} parent=1 // pred_fallthru
      _
    // Predicated region
    $region26: #{tpu_custom_call.1} parent=1 // pred_check
      _
    $region27: #{tpu_custom_call.1} parent=1 // pred_check_branch
      %71 = sbr.rel (0) target = $region29
    $region28: #{tpu_custom_call.1} parent=1 // pred_region
      %72 = dma.done [#allocation8], 256
    $region29: #{tpu_custom_call.1} parent=1 // pred_fallthru
      _
    // Predicated region
    $region30: #{tpu_custom_call.1} parent=1 // pred_check
      _
    $region31: #{tpu_custom_call.1} parent=1 // pred_check_branch
      %74 = sbr.rel (0) target = $region33
    $region32: #{tpu_custom_call.1} parent=1 // pred_region
      %75 = dma.done [#allocation8], 256
    $region33: #{tpu_custom_call.1} parent=1 // pred_fallthru
      _
    // Predicated region
    $region34: #{tpu_custom_call.1} parent=1 // pred_check
      _
    $region35: #{tpu_custom_call.1} parent=1 // pred_check_branch
      %77 = sbr.rel (0) target = $region37
    $region36: #{tpu_custom_call.1} parent=1 // pred_region
      %78 = dma.done [#allocation11], 1024
    $region37: #{tpu_custom_call.1} parent=1 // pred_fallthru
      _
    %p80 = scmp.eq.s32.totalorder 0, 0
    // Predicated region
    $region38: #{tpu_custom_call.1} parent=1 // pred_check
      %p81 = pneg %p80
    $region39: #{tpu_custom_call.1} parent=1 // pred_check_branch
      %83 = sbr.rel (%p81) target = $region41
    $region40: #{tpu_custom_call.1} parent=1 // pred_region
      %v84 = vld [vmem:[#allocation7] sm:$0xff]
      %v85 = vld [vmem:[#allocation7 + $0x8] sm:$0xff]
      %86 = vst [vmem:[#allocation2] sm:$0xff] %v84
      %87 = vst [vmem:[#allocation2 + $0x8] sm:$0xff] %v85
      %v88 = vld [vmem:[#allocation9] sm:$0xff]
      %v89 = vld [vmem:[#allocation9 + $0x8] sm:$0xff]
      %v90 = vpack.c.bf16 %v89, %v88
      %91 = vst [vmem:[#allocation3] sm:$0xff] %v90
    $region41: #{tpu_custom_call.1} parent=1 // pred_fallthru
      _
    %v92 = vld [vmem:[%s4] sm:$0x1]
    %v93 = vlaneseq
    %v94 = vshrl.u32 %v93, 7
    %v95 = vsub.s32 0, %v94
    %v96 = vrot.slane %v92, %v95
    %v97 = vld [vmem:[%s4 + $0x1] sm:$0x1]
    %v98 = vlaneseq
    %v99 = vshrl.u32 %v98, 7
    %v100 = vsub.s32 0, %v99
    %v101 = vrot.slane %v97, %v100
    %v102 = vld [vmem:[#allocation10] sm:$0xf]
    %v103 = vld [vmem:[#allocation10 + $0x4] sm:$0xf]
    %v104 = vld [vmem:[#allocation10 + $0x8] sm:$0xf]
    %v105 = vld [vmem:[#allocation10 + $0xc] sm:$0xf]
    %v106 = vld [vmem:[#allocation10 + $0x10] sm:$0xf]
    %v107 = vld [vmem:[#allocation10 + $0x14] sm:$0xf]
    %v108 = vld [vmem:[#allocation10 + $0x18] sm:$0xf]
    %v109 = vld [vmem:[#allocation10 + $0x1c] sm:$0xf]
    %v110 = vld [vmem:[#allocation10 + $0x20] sm:$0xf]
    %v111 = vld [vmem:[#allocation10 + $0x24] sm:$0xf]
    %v112 = vld [vmem:[#allocation10 + $0x28] sm:$0xf]
    %v113 = vld [vmem:[#allocation10 + $0x2c] sm:$0xf]
    %v114 = vld [vmem:[#allocation10 + $0x30] sm:$0xf]
    %v115 = vld [vmem:[#allocation10 + $0x34] sm:$0xf]
    %v116 = vld [vmem:[#allocation10 + $0x38] sm:$0xf]
    %v117 = vld [vmem:[#allocation10 + $0x3c] sm:$0xf]
    %v118 = vld [vmem:[#allocation3] sm:$0xff]
    %v135 = vunpack.c.l.b16 %v102
    %v136 = vunpack.c.l.b16 %v103
    %v137 = vunpack.c.l.b16 %v104
    %v138 = vunpack.c.l.b16 %v105
    %v139 = vunpack.c.l.b16 %v106
    %v140 = vunpack.c.l.b16 %v107
    %v141 = vunpack.c.l.b16 %v108
    %v142 = vunpack.c.l.b16 %v109
    %v143 = vunpack.c.l.b16 %v110
    %v144 = vunpack.c.l.b16 %v111
    %v145 = vunpack.c.l.b16 %v112
    %v146 = vunpack.c.l.b16 %v113
    %v147 = vunpack.c.l.b16 %v114
    %v148 = vunpack.c.l.b16 %v115
    %v149 = vunpack.c.l.b16 %v116
    %v150 = vunpack.c.l.b16 %v117
    %v151 = vpack.c.b16 %v136, %v135
    %v152 = vpack.c.b16 %v138, %v137
    %v153 = vpack.c.b16 %v140, %v139
    %v154 = vpack.c.b16 %v142, %v141
    %v155 = vpack.c.b16 %v144, %v143
    %v156 = vpack.c.b16 %v146, %v145
    %v157 = vpack.c.b16 %v148, %v147
    %v158 = vpack.c.b16 %v150, %v149
    %167 = vmatprep.subr.bf16.mxu0 0
    %168 = vmatpush1.bf16.msra.mxu0 %v151
    %169 = vmatprep.subr.bf16.mxu0 0
    %170 = vmatpush1.bf16.msra.mxu0 %v152
    %171 = vmatprep.subr.bf16.mxu0 0
    %172 = vmatpush1.bf16.msra.mxu0 %v153
    %173 = vmatprep.subr.bf16.mxu0 0
    %174 = vmatpush1.bf16.msra.mxu0 %v154
    %175 = vmatprep.subr.bf16.mxu0 0
    %176 = vmatpush1.bf16.msra.mxu0 %v155
    %177 = vmatprep.subr.bf16.mxu0 0
    %178 = vmatpush1.bf16.msra.mxu0 %v156
    %179 = vmatprep.subr.bf16.mxu0 0
    %180 = vmatpush1.bf16.msra.mxu0 %v157
    %181 = vmatprep.subr.bf16.mxu0 0
    %182 = vmatpush1.bf16.msra.mxu0 %v158
    %183 = vmatprep.subr.bf16.mxu0 0
    %184 = vmatpush1.bf16.msra.mxu0 0
    %185 = vmatprep.subr.bf16.mxu0 0
    %186 = vmatpush1.bf16.msra.mxu0 0
    %187 = vmatprep.subr.bf16.mxu0 0
    %188 = vmatpush1.bf16.msra.mxu0 0
    %189 = vmatprep.subr.bf16.mxu0 0
    %190 = vmatpush1.bf16.msra.mxu0 0
    %191 = vmatprep.subr.bf16.mxu0 0
    %192 = vmatpush1.bf16.msra.mxu0 0
    %193 = vmatprep.subr.bf16.mxu0 0
    %194 = vmatpush1.bf16.msra.mxu0 0
    %195 = vmatprep.subr.bf16.mxu0 0
    %196 = vmatpush1.bf16.msra.mxu0 0
    %197 = vmatprep.subr.bf16.mxu0 0
    %198 = vmatpush1.bf16.msra.mxu0 0
    %199 = vmatprep.mubr.bf16.mxu0 0
    %200 = vmatmul.mubr.bf16.gmra.mrb[0].mxu0 %v118
    %v201 = vpop.f32.mrb[0].mxu0
    %v202 = vadd.f32 0.0, %v201
    %v203 = vpop.f32.mrb[0].mxu0
    %v204 = vpop.f32.mrb[0].mxu0
    %v205 = vadd.f32 0.0, %v204
    %v206 = vpop.f32.mrb[0].mxu0
    %207 = vdwg.mxu0
    %v208 = vld [vmem:[#allocation4] sm:$0xff]
    %v209 = vld [vmem:[#allocation4 + $0x8] sm:$0xff]
    %v210 = vadd.f32 %v208, %v202
    %v211 = vadd.f32 %v209, %v205
    %v212 = vld [vmem:[#allocation2] sm:$0xff]
    %v213 = vld [vmem:[#allocation2 + $0x8] sm:$0xff]
    %v214 = vmul.f32 %v212, %v96
    %v215 = vmul.f32 %v213, %v96
    %v216 = vmul.f32 %v101, %v210
    %v217 = vmul.f32 %v101, %v211
    %v218 = vadd.f32 %v214, %v216
    %v219 = vadd.f32 %v215, %v217
    %v220 = vunpack.c.l.bf16 %v118
    %v221 = vunpack.c.h.bf16 %v118
    %v222 = vsub.f32 %v218, %v220
    %v223 = vsub.f32 %v219, %v221
    %vm224 = vcmp.gt.f32.partialorder %v222, 1.0
    %vm225 = vcmp.gt.f32.partialorder %v223, 1.0
    %226 = vst [vmem:[#allocation2] sm:$0xff] %v222
    %227 = vst [vmem:[#allocation2 + $0x8] sm:$0xff] %v223
    %v228 = vsel %vm224, 1, 0
    %v229 = vsel %vm225, 1, 0
    %v230 = vcvt.s32.f32 %v228
    %v231 = vcvt.s32.f32 %v229
    %v232 = vpack.c.bf16 %v231, %v230
    %233 = vst [vmem:[#allocation3] sm:$0xff] %v232
    %234 = vst [vmem:[#allocation12] sm:$0xff] %v222
    %235 = vst [vmem:[#allocation12 + $0x8] sm:$0xff] %v223
    %v237 = vunpack.c.l.b16 %v232
    %v238 = vunpack.c.h.b16 %v232
    %v239 = vpack.c.b16 %v237, %v237
    %v240 = vpack.c.b16 %v238, %v238
    %243 = vst [vmem:[#allocation13] sm:$0xf] %v239
    %244 = vst [vmem:[#allocation13 + $0x4] sm:$0xf] %v240
    %v245 = vld [vmem:[#allocation3] sm:$0xff]
    %246 = vmatprep.subr.bf16.mxu0 0
    %247 = vmatpush1.bf16.msra.mxu0 %v151
    %248 = vmatprep.subr.bf16.mxu0 0
    %249 = vmatpush1.bf16.msra.mxu0 %v152
    %250 = vmatprep.subr.bf16.mxu0 0
    %251 = vmatpush1.bf16.msra.mxu0 %v153
    %252 = vmatprep.subr.bf16.mxu0 0
    %253 = vmatpush1.bf16.msra.mxu0 %v154
    %254 = vmatprep.subr.bf16.mxu0 0
    %255 = vmatpush1.bf16.msra.mxu0 %v155
    %256 = vmatprep.subr.bf16.mxu0 0
    %257 = vmatpush1.bf16.msra.mxu0 %v156
    %258 = vmatprep.subr.bf16.mxu0 0
    %259 = vmatpush1.bf16.msra.mxu0 %v157
    %260 = vmatprep.subr.bf16.mxu0 0
    %261 = vmatpush1.bf16.msra.mxu0 %v158
    %262 = vmatprep.subr.bf16.mxu0 0
    %263 = vmatpush1.bf16.msra.mxu0 0
    %264 = vmatprep.subr.bf16.mxu0 0
    %265 = vmatpush1.bf16.msra.mxu0 0
    %266 = vmatprep.subr.bf16.mxu0 0
    %267 = vmatpush1.bf16.msra.mxu0 0
    %268 = vmatprep.subr.bf16.mxu0 0
    %269 = vmatpush1.bf16.msra.mxu0 0
    %270 = vmatprep.subr.bf16.mxu0 0
    %271 = vmatpush1.bf16.msra.mxu0 0
    %272 = vmatprep.subr.bf16.mxu0 0
    %273 = vmatpush1.bf16.msra.mxu0 0
    %274 = vmatprep.subr.bf16.mxu0 0
    %275 = vmatpush1.bf16.msra.mxu0 0
    %276 = vmatprep.subr.bf16.mxu0 0
    %277 = vmatpush1.bf16.msra.mxu0 0
    %278 = vmatprep.mubr.bf16.mxu0 0
    %279 = vmatmul.mubr.bf16.gmra.mrb[0].mxu0 %v245
    %v280 = vpop.f32.mrb[0].mxu0
    %v281 = vadd.f32 0.0, %v280
    %v282 = vpop.f32.mrb[0].mxu0
    %v283 = vpop.f32.mrb[0].mxu0
    %v284 = vadd.f32 0.0, %v283
    %v285 = vpop.f32.mrb[0].mxu0
    %286 = vdwg.mxu0
    %s287 = scalar_lea.vmem [#allocation4], 16
    %v288 = vld [vmem:[%s287] sm:$0xff]
    %v289 = vld [vmem:[%s287 + $0x8] sm:$0xff]
    %v290 = vadd.f32 %v288, %v281
    %v291 = vadd.f32 %v289, %v284
    %v292 = vld [vmem:[#allocation2] sm:$0xff]
    %v293 = vld [vmem:[#allocation2 + $0x8] sm:$0xff]
    %v294 = vmul.f32 %v292, %v96
    %v295 = vmul.f32 %v293, %v96
    %v296 = vmul.f32 %v101, %v290
    %v297 = vmul.f32 %v101, %v291
    %v298 = vadd.f32 %v294, %v296
    %v299 = vadd.f32 %v295, %v297
    %v300 = vunpack.c.l.bf16 %v245
    %v301 = vunpack.c.h.bf16 %v245
    %v302 = vsub.f32 %v298, %v300
    %v303 = vsub.f32 %v299, %v301
    %vm304 = vcmp.gt.f32.partialorder %v302, 1.0
    %vm305 = vcmp.gt.f32.partialorder %v303, 1.0
    %306 = vst [vmem:[#allocation2] sm:$0xff] %v302
    %307 = vst [vmem:[#allocation2 + $0x8] sm:$0xff] %v303
    %v308 = vsel %vm304, 1, 0
    %v309 = vsel %vm305, 1, 0
    %v310 = vcvt.s32.f32 %v308
    %v311 = vcvt.s32.f32 %v309
    %v312 = vpack.c.bf16 %v311, %v310
    %313 = vst [vmem:[#allocation3] sm:$0xff] %v312
    %s314 = scalar_lea.vmem [#allocation12], 16
    %315 = vst [vmem:[%s314] sm:$0xff] %v302
    %316 = vst [vmem:[%s314 + $0x8] sm:$0xff] %v303
    %v318 = vunpack.c.l.b16 %v312
    %v319 = vunpack.c.h.b16 %v312
    %v320 = vpack.c.b16 %v318, %v318
    %v321 = vpack.c.b16 %v319, %v319
    %s324 = scalar_lea.vmem [#allocation13], 8
    %325 = vst [vmem:[%s324] sm:$0xf] %v320
    %326 = vst [vmem:[%s324 + $0x4] sm:$0xf] %v321
    %v327 = vld [vmem:[#allocation3] sm:$0xff]
    %328 = vmatprep.subr.bf16.mxu0 0
    %329 = vmatpush1.bf16.msra.mxu0 %v151
    %330 = vmatprep.subr.bf16.mxu0 0
    %331 = vmatpush1.bf16.msra.mxu0 %v152
    %332 = vmatprep.subr.bf16.mxu0 0
    %333 = vmatpush1.bf16.msra.mxu0 %v153
    %334 = vmatprep.subr.bf16.mxu0 0
    %335 = vmatpush1.bf16.msra.mxu0 %v154
    %336 = vmatprep.subr.bf16.mxu0 0
    %337 = vmatpush1.bf16.msra.mxu0 %v155
    %338 = vmatprep.subr.bf16.mxu0 0
    %339 = vmatpush1.bf16.msra.mxu0 %v156
    %340 = vmatprep.subr.bf16.mxu0 0
    %341 = vmatpush1.bf16.msra.mxu0 %v157
    %342 = vmatprep.subr.bf16.mxu0 0
    %343 = vmatpush1.bf16.msra.mxu0 %v158
    %344 = vmatprep.subr.bf16.mxu0 0
    %345 = vmatpush1.bf16.msra.mxu0 0
    %346 = vmatprep.subr.bf16.mxu0 0
    %347 = vmatpush1.bf16.msra.mxu0 0
    %348 = vmatprep.subr.bf16.mxu0 0
    %349 = vmatpush1.bf16.msra.mxu0 0
    %350 = vmatprep.subr.bf16.mxu0 0
    %351 = vmatpush1.bf16.msra.mxu0 0
    %352 = vmatprep.subr.bf16.mxu0 0
    %353 = vmatpush1.bf16.msra.mxu0 0
    %354 = vmatprep.subr.bf16.mxu0 0
    %355 = vmatpush1.bf16.msra.mxu0 0
    %356 = vmatprep.subr.bf16.mxu0 0
    %357 = vmatpush1.bf16.msra.mxu0 0
    %358 = vmatprep.subr.bf16.mxu0 0
    %359 = vmatpush1.bf16.msra.mxu0 0
    %360 = vmatprep.mubr.bf16.mxu0 0
    %361 = vmatmul.mubr.bf16.gmra.mrb[0].mxu0 %v327
    %v362 = vpop.f32.mrb[0].mxu0
    %v363 = vadd.f32 0.0, %v362
    %v364 = vpop.f32.mrb[0].mxu0
    %v365 = vpop.f32.mrb[0].mxu0
    %v366 = vadd.f32 0.0, %v365
    %v367 = vpop.f32.mrb[0].mxu0
    %368 = vdwg.mxu0
    %s369 = scalar_lea.vmem [#allocation4], 32
    %v370 = vld [vmem:[%s369] sm:$0xff]
    %v371 = vld [vmem:[%s369 + $0x8] sm:$0xff]
    %v372 = vadd.f32 %v370, %v363
    %v373 = vadd.f32 %v371, %v366
    %v374 = vld [vmem:[#allocation2] sm:$0xff]
    %v375 = vld [vmem:[#allocation2 + $0x8] sm:$0xff]
    %v376 = vmul.f32 %v374, %v96
    %v377 = vmul.f32 %v375, %v96
    %v378 = vmul.f32 %v101, %v372
    %v379 = vmul.f32 %v101, %v373
    %v380 = vadd.f32 %v376, %v378
    %v381 = vadd.f32 %v377, %v379
    %v382 = vunpack.c.l.bf16 %v327
    %v383 = vunpack.c.h.bf16 %v327
    %v384 = vsub.f32 %v380, %v382
    %v385 = vsub.f32 %v381, %v383
    %vm386 = vcmp.gt.f32.partialorder %v384, 1.0
    %vm387 = vcmp.gt.f32.partialorder %v385, 1.0
    %388 = vst [vmem:[#allocation2] sm:$0xff] %v384
    %389 = vst [vmem:[#allocation2 + $0x8] sm:$0xff] %v385
    %v390 = vsel %vm386, 1, 0
    %v391 = vsel %vm387, 1, 0
    %v392 = vcvt.s32.f32 %v390
    %v393 = vcvt.s32.f32 %v391
    %v394 = vpack.c.bf16 %v393, %v392
    %395 = vst [vmem:[#allocation3] sm:$0xff] %v394
    %s396 = scalar_lea.vmem [#allocation12], 32
    %397 = vst [vmem:[%s396] sm:$0xff] %v384
    %398 = vst [vmem:[%s396 + $0x8] sm:$0xff] %v385
    %v400 = vunpack.c.l.b16 %v394
    %v401 = vunpack.c.h.b16 %v394
    %v402 = vpack.c.b16 %v400, %v400
    %v403 = vpack.c.b16 %v401, %v401
    %s406 = scalar_lea.vmem [#allocation13], 16
    %407 = vst [vmem:[%s406] sm:$0xf] %v402
    %408 = vst [vmem:[%s406 + $0x4] sm:$0xf] %v403
    %v409 = vld [vmem:[#allocation3] sm:$0xff]
    %410 = vmatprep.subr.bf16.mxu0 0
    %411 = vmatpush1.bf16.msra.mxu0 %v151
    %412 = vmatprep.subr.bf16.mxu0 0
    %413 = vmatpush1.bf16.msra.mxu0 %v152
    %414 = vmatprep.subr.bf16.mxu0 0
    %415 = vmatpush1.bf16.msra.mxu0 %v153
    %416 = vmatprep.subr.bf16.mxu0 0
    %417 = vmatpush1.bf16.msra.mxu0 %v154
    %418 = vmatprep.subr.bf16.mxu0 0
    %419 = vmatpush1.bf16.msra.mxu0 %v155
    %420 = vmatprep.subr.bf16.mxu0 0
    %421 = vmatpush1.bf16.msra.mxu0 %v156
    %422 = vmatprep.subr.bf16.mxu0 0
    %423 = vmatpush1.bf16.msra.mxu0 %v157
    %424 = vmatprep.subr.bf16.mxu0 0
    %425 = vmatpush1.bf16.msra.mxu0 %v158
    %426 = vmatprep.subr.bf16.mxu0 0
    %427 = vmatpush1.bf16.msra.mxu0 0
    %428 = vmatprep.subr.bf16.mxu0 0
    %429 = vmatpush1.bf16.msra.mxu0 0
    %430 = vmatprep.subr.bf16.mxu0 0
    %431 = vmatpush1.bf16.msra.mxu0 0
    %432 = vmatprep.subr.bf16.mxu0 0
    %433 = vmatpush1.bf16.msra.mxu0 0
    %434 = vmatprep.subr.bf16.mxu0 0
    %435 = vmatpush1.bf16.msra.mxu0 0
    %436 = vmatprep.subr.bf16.mxu0 0
    %437 = vmatpush1.bf16.msra.mxu0 0
    %438 = vmatprep.subr.bf16.mxu0 0
    %439 = vmatpush1.bf16.msra.mxu0 0
    %440 = vmatprep.subr.bf16.mxu0 0
    %441 = vmatpush1.bf16.msra.mxu0 0
    %442 = vmatprep.mubr.bf16.mxu0 0
    %443 = vmatmul.mubr.bf16.gmra.mrb[0].mxu0 %v409
    %v444 = vpop.f32.mrb[0].mxu0
    %v445 = vadd.f32 0.0, %v444
    %v446 = vpop.f32.mrb[0].mxu0
    %v447 = vpop.f32.mrb[0].mxu0
    %v448 = vadd.f32 0.0, %v447
    %v449 = vpop.f32.mrb[0].mxu0
    %450 = vdwg.mxu0
    %s451 = scalar_lea.vmem [#allocation4], 48
    %v452 = vld [vmem:[%s451] sm:$0xff]
    %v453 = vld [vmem:[%s451 + $0x8] sm:$0xff]
    %v454 = vadd.f32 %v452, %v445
    %v455 = vadd.f32 %v453, %v448
    %v456 = vld [vmem:[#allocation2] sm:$0xff]
    %v457 = vld [vmem:[#allocation2 + $0x8] sm:$0xff]
    %v458 = vmul.f32 %v456, %v96
    %v459 = vmul.f32 %v457, %v96
    %v460 = vmul.f32 %v101, %v454
    %v461 = vmul.f32 %v101, %v455
    %v462 = vadd.f32 %v458, %v460
    %v463 = vadd.f32 %v459, %v461
    %v464 = vunpack.c.l.bf16 %v409
    %v465 = vunpack.c.h.bf16 %v409
    %v466 = vsub.f32 %v462, %v464
    %v467 = vsub.f32 %v463, %v465
    %vm468 = vcmp.gt.f32.partialorder %v466, 1.0
    %vm469 = vcmp.gt.f32.partialorder %v467, 1.0
    %470 = vst [vmem:[#allocation2] sm:$0xff] %v466
    %471 = vst [vmem:[#allocation2 + $0x8] sm:$0xff] %v467
    %v472 = vsel %vm468, 1, 0
    %v473 = vsel %vm469, 1, 0
    %v474 = vcvt.s32.f32 %v472
    %v475 = vcvt.s32.f32 %v473
    %v476 = vpack.c.bf16 %v475, %v474
    %477 = vst [vmem:[#allocation3] sm:$0xff] %v476
    %s478 = scalar_lea.vmem [#allocation12], 48
    %479 = vst [vmem:[%s478] sm:$0xff] %v466
    %480 = vst [vmem:[%s478 + $0x8] sm:$0xff] %v467
    %v482 = vunpack.c.l.b16 %v476
    %v483 = vunpack.c.h.b16 %v476
    %v484 = vpack.c.b16 %v482, %v482
    %v485 = vpack.c.b16 %v483, %v483
    %s488 = scalar_lea.vmem [#allocation13], 24
    %489 = vst [vmem:[%s488] sm:$0xf] %v484
    %490 = vst [vmem:[%s488 + $0x4] sm:$0xf] %v485
    %v491 = vld [vmem:[#allocation3] sm:$0xff]
    %492 = vmatprep.subr.bf16.mxu0 0
    %493 = vmatpush1.bf16.msra.mxu0 %v151
    %494 = vmatprep.subr.bf16.mxu0 0
    %495 = vmatpush1.bf16.msra.mxu0 %v152
    %496 = vmatprep.subr.bf16.mxu0 0
    %497 = vmatpush1.bf16.msra.mxu0 %v153
    %498 = vmatprep.subr.bf16.mxu0 0
    %499 = vmatpush1.bf16.msra.mxu0 %v154
    %500 = vmatprep.subr.bf16.mxu0 0
    %501 = vmatpush1.bf16.msra.mxu0 %v155
    %502 = vmatprep.subr.bf16.mxu0 0
    %503 = vmatpush1.bf16.msra.mxu0 %v156
    %504 = vmatprep.subr.bf16.mxu0 0
    %505 = vmatpush1.bf16.msra.mxu0 %v157
    %506 = vmatprep.subr.bf16.mxu0 0
    %507 = vmatpush1.bf16.msra.mxu0 %v158
    %508 = vmatprep.subr.bf16.mxu0 0
    %509 = vmatpush1.bf16.msra.mxu0 0
    %510 = vmatprep.subr.bf16.mxu0 0
    %511 = vmatpush1.bf16.msra.mxu0 0
    %512 = vmatprep.subr.bf16.mxu0 0
    %513 = vmatpush1.bf16.msra.mxu0 0
    %514 = vmatprep.subr.bf16.mxu0 0
    %515 = vmatpush1.bf16.msra.mxu0 0
    %516 = vmatprep.subr.bf16.mxu0 0
    %517 = vmatpush1.bf16.msra.mxu0 0
    %518 = vmatprep.subr.bf16.mxu0 0
    %519 = vmatpush1.bf16.msra.mxu0 0
    %520 = vmatprep.subr.bf16.mxu0 0
    %521 = vmatpush1.bf16.msra.mxu0 0
    %522 = vmatprep.subr.bf16.mxu0 0
    %523 = vmatpush1.bf16.msra.mxu0 0
    %524 = vmatprep.mubr.bf16.mxu0 0
    %525 = vmatmul.mubr.bf16.gmra.mrb[0].mxu0 %v491
    %v526 = vpop.f32.mrb[0].mxu0
    %v527 = vadd.f32 0.0, %v526
    %v528 = vpop.f32.mrb[0].mxu0
    %v529 = vpop.f32.mrb[0].mxu0
    %v530 = vadd.f32 0.0, %v529
    %v531 = vpop.f32.mrb[0].mxu0
    %532 = vdwg.mxu0
    %s533 = scalar_lea.vmem [#allocation4], 64
    %v534 = vld [vmem:[%s533] sm:$0xff]
    %v535 = vld [vmem:[%s533 + $0x8] sm:$0xff]
    %v536 = vadd.f32 %v534, %v527
    %v537 = vadd.f32 %v535, %v530
    %v538 = vld [vmem:[#allocation2] sm:$0xff]
    %v539 = vld [vmem:[#allocation2 + $0x8] sm:$0xff]
    %v540 = vmul.f32 %v538, %v96
    %v541 = vmul.f32 %v539, %v96
    %v542 = vmul.f32 %v101, %v536
    %v543 = vmul.f32 %v101, %v537
    %v544 = vadd.f32 %v540, %v542
    %v545 = vadd.f32 %v541, %v543
    %v546 = vunpack.c.l.bf16 %v491
    %v547 = vunpack.c.h.bf16 %v491
    %v548 = vsub.f32 %v544, %v546
    %v549 = vsub.f32 %v545, %v547
    %vm550 = vcmp.gt.f32.partialorder %v548, 1.0
    %vm551 = vcmp.gt.f32.partialorder %v549, 1.0
    %552 = vst [vmem:[#allocation2] sm:$0xff] %v548
    %553 = vst [vmem:[#allocation2 + $0x8] sm:$0xff] %v549
    %v554 = vsel %vm550, 1, 0
    %v555 = vsel %vm551, 1, 0
    %v556 = vcvt.s32.f32 %v554
    %v557 = vcvt.s32.f32 %v555
    %v558 = vpack.c.bf16 %v557, %v556
    %559 = vst [vmem:[#allocation3] sm:$0xff] %v558
    %s560 = scalar_lea.vmem [#allocation12], 64
    %561 = vst [vmem:[%s560] sm:$0xff] %v548
    %562 = vst [vmem:[%s560 + $0x8] sm:$0xff] %v549
    %v564 = vunpack.c.l.b16 %v558
    %v565 = vunpack.c.h.b16 %v558
    %v566 = vpack.c.b16 %v564, %v564
    %v567 = vpack.c.b16 %v565, %v565
    %s570 = scalar_lea.vmem [#allocation13], 32
    %571 = vst [vmem:[%s570] sm:$0xf] %v566
    %572 = vst [vmem:[%s570 + $0x4] sm:$0xf] %v567
    %v573 = vld [vmem:[#allocation3] sm:$0xff]
    %574 = vmatprep.subr.bf16.mxu0 0
    %575 = vmatpush1.bf16.msra.mxu0 %v151
    %576 = vmatprep.subr.bf16.mxu0 0
    %577 = vmatpush1.bf16.msra.mxu0 %v152
    %578 = vmatprep.subr.bf16.mxu0 0
    %579 = vmatpush1.bf16.msra.mxu0 %v153
    %580 = vmatprep.subr.bf16.mxu0 0
    %581 = vmatpush1.bf16.msra.mxu0 %v154
    %582 = vmatprep.subr.bf16.mxu0 0
    %583 = vmatpush1.bf16.msra.mxu0 %v155
    %584 = vmatprep.subr.bf16.mxu0 0
    %585 = vmatpush1.bf16.msra.mxu0 %v156
    %586 = vmatprep.subr.bf16.mxu0 0
    %587 = vmatpush1.bf16.msra.mxu0 %v157
    %588 = vmatprep.subr.bf16.mxu0 0
    %589 = vmatpush1.bf16.msra.mxu0 %v158
    %590 = vmatprep.subr.bf16.mxu0 0
    %591 = vmatpush1.bf16.msra.mxu0 0
    %592 = vmatprep.subr.bf16.mxu0 0
    %593 = vmatpush1.bf16.msra.mxu0 0
    %594 = vmatprep.subr.bf16.mxu0 0
    %595 = vmatpush1.bf16.msra.mxu0 0
    %596 = vmatprep.subr.bf16.mxu0 0
    %597 = vmatpush1.bf16.msra.mxu0 0
    %598 = vmatprep.subr.bf16.mxu0 0
    %599 = vmatpush1.bf16.msra.mxu0 0
    %600 = vmatprep.subr.bf16.mxu0 0
    %601 = vmatpush1.bf16.msra.mxu0 0
    %602 = vmatprep.subr.bf16.mxu0 0
    %603 = vmatpush1.bf16.msra.mxu0 0
    %604 = vmatprep.subr.bf16.mxu0 0
    %605 = vmatpush1.bf16.msra.mxu0 0
    %606 = vmatprep.mubr.bf16.mxu0 0
    %607 = vmatmul.mubr.bf16.gmra.mrb[0].mxu0 %v573
    %v608 = vpop.f32.mrb[0].mxu0
    %v609 = vadd.f32 0.0, %v608
    %v610 = vpop.f32.mrb[0].mxu0
    %v611 = vpop.f32.mrb[0].mxu0
    %v612 = vadd.f32 0.0, %v611
    %v613 = vpop.f32.mrb[0].mxu0
    %614 = vdwg.mxu0
    %s615 = scalar_lea.vmem [#allocation4], 80
    %v616 = vld [vmem:[%s615] sm:$0xff]
    %v617 = vld [vmem:[%s615 + $0x8] sm:$0xff]
    %v618 = vadd.f32 %v616, %v609
    %v619 = vadd.f32 %v617, %v612
    %v620 = vld [vmem:[#allocation2] sm:$0xff]
    %v621 = vld [vmem:[#allocation2 + $0x8] sm:$0xff]
    %v622 = vmul.f32 %v620, %v96
    %v623 = vmul.f32 %v621, %v96
    %v624 = vmul.f32 %v101, %v618
    %v625 = vmul.f32 %v101, %v619
    %v626 = vadd.f32 %v622, %v624
    %v627 = vadd.f32 %v623, %v625
    %v628 = vunpack.c.l.bf16 %v573
    %v629 = vunpack.c.h.bf16 %v573
    %v630 = vsub.f32 %v626, %v628
    %v631 = vsub.f32 %v627, %v629
    %vm632 = vcmp.gt.f32.partialorder %v630, 1.0
    %vm633 = vcmp.gt.f32.partialorder %v631, 1.0
    %634 = vst [vmem:[#allocation2] sm:$0xff] %v630
    %635 = vst [vmem:[#allocation2 + $0x8] sm:$0xff] %v631
    %v636 = vsel %vm632, 1, 0
    %v637 = vsel %vm633, 1, 0
    %v638 = vcvt.s32.f32 %v636
    %v639 = vcvt.s32.f32 %v637
    %v640 = vpack.c.bf16 %v639, %v638
    %641 = vst [vmem:[#allocation3] sm:$0xff] %v640
    %s642 = scalar_lea.vmem [#allocation12], 80
    %643 = vst [vmem:[%s642] sm:$0xff] %v630
    %644 = vst [vmem:[%s642 + $0x8] sm:$0xff] %v631
    %v646 = vunpack.c.l.b16 %v640
    %v647 = vunpack.c.h.b16 %v640
    %v648 = vpack.c.b16 %v646, %v646
    %v649 = vpack.c.b16 %v647, %v647
    %s652 = scalar_lea.vmem [#allocation13], 40
    %653 = vst [vmem:[%s652] sm:$0xf] %v648
    %654 = vst [vmem:[%s652 + $0x4] sm:$0xf] %v649
    %v655 = vld [vmem:[#allocation3] sm:$0xff]
    %656 = vmatprep.subr.bf16.mxu0 0
    %657 = vmatpush1.bf16.msra.mxu0 %v151
    %658 = vmatprep.subr.bf16.mxu0 0
    %659 = vmatpush1.bf16.msra.mxu0 %v152
    %660 = vmatprep.subr.bf16.mxu0 0
    %661 = vmatpush1.bf16.msra.mxu0 %v153
    %662 = vmatprep.subr.bf16.mxu0 0
    %663 = vmatpush1.bf16.msra.mxu0 %v154
    %664 = vmatprep.subr.bf16.mxu0 0
    %665 = vmatpush1.bf16.msra.mxu0 %v155
    %666 = vmatprep.subr.bf16.mxu0 0
    %667 = vmatpush1.bf16.msra.mxu0 %v156
    %668 = vmatprep.subr.bf16.mxu0 0
    %669 = vmatpush1.bf16.msra.mxu0 %v157
    %670 = vmatprep.subr.bf16.mxu0 0
    %671 = vmatpush1.bf16.msra.mxu0 %v158
    %672 = vmatprep.subr.bf16.mxu0 0
    %673 = vmatpush1.bf16.msra.mxu0 0
    %674 = vmatprep.subr.bf16.mxu0 0
    %675 = vmatpush1.bf16.msra.mxu0 0
    %676 = vmatprep.subr.bf16.mxu0 0
    %677 = vmatpush1.bf16.msra.mxu0 0
    %678 = vmatprep.subr.bf16.mxu0 0
    %679 = vmatpush1.bf16.msra.mxu0 0
    %680 = vmatprep.subr.bf16.mxu0 0
    %681 = vmatpush1.bf16.msra.mxu0 0
    %682 = vmatprep.subr.bf16.mxu0 0
    %683 = vmatpush1.bf16.msra.mxu0 0
    %684 = vmatprep.subr.bf16.mxu0 0
    %685 = vmatpush1.bf16.msra.mxu0 0
    %686 = vmatprep.subr.bf16.mxu0 0
    %687 = vmatpush1.bf16.msra.mxu0 0
    %688 = vmatprep.mubr.bf16.mxu0 0
    %689 = vmatmul.mubr.bf16.gmra.mrb[0].mxu0 %v655
    %v690 = vpop.f32.mrb[0].mxu0
    %v691 = vadd.f32 0.0, %v690
    %v692 = vpop.f32.mrb[0].mxu0
    %v693 = vpop.f32.mrb[0].mxu0
    %v694 = vadd.f32 0.0, %v693
    %v695 = vpop.f32.mrb[0].mxu0
    %696 = vdwg.mxu0
    %s697 = scalar_lea.vmem [#allocation4], 96
    %v698 = vld [vmem:[%s697] sm:$0xff]
    %v699 = vld [vmem:[%s697 + $0x8] sm:$0xff]
    %v700 = vadd.f32 %v698, %v691
    %v701 = vadd.f32 %v699, %v694
    %v702 = vld [vmem:[#allocation2] sm:$0xff]
    %v703 = vld [vmem:[#allocation2 + $0x8] sm:$0xff]
    %v704 = vmul.f32 %v702, %v96
    %v705 = vmul.f32 %v703, %v96
    %v706 = vmul.f32 %v101, %v700
    %v707 = vmul.f32 %v101, %v701
    %v708 = vadd.f32 %v704, %v706
    %v709 = vadd.f32 %v705, %v707
    %v710 = vunpack.c.l.bf16 %v655
    %v711 = vunpack.c.h.bf16 %v655
    %v712 = vsub.f32 %v708, %v710
    %v713 = vsub.f32 %v709, %v711
    %vm714 = vcmp.gt.f32.partialorder %v712, 1.0
    %vm715 = vcmp.gt.f32.partialorder %v713, 1.0
    %716 = vst [vmem:[#allocation2] sm:$0xff] %v712
    %717 = vst [vmem:[#allocation2 + $0x8] sm:$0xff] %v713
    %v718 = vsel %vm714, 1, 0
    %v719 = vsel %vm715, 1, 0
    %v720 = vcvt.s32.f32 %v718
    %v721 = vcvt.s32.f32 %v719
    %v722 = vpack.c.bf16 %v721, %v720
    %723 = vst [vmem:[#allocation3] sm:$0xff] %v722
    %s724 = scalar_lea.vmem [#allocation12], 96
    %725 = vst [vmem:[%s724] sm:$0xff] %v712
    %726 = vst [vmem:[%s724 + $0x8] sm:$0xff] %v713
    %v728 = vunpack.c.l.b16 %v722
    %v729 = vunpack.c.h.b16 %v722
    %v730 = vpack.c.b16 %v728, %v728
    %v731 = vpack.c.b16 %v729, %v729
    %s734 = scalar_lea.vmem [#allocation13], 48
    %735 = vst [vmem:[%s734] sm:$0xf] %v730
    %736 = vst [vmem:[%s734 + $0x4] sm:$0xf] %v731
    %v737 = vld [vmem:[#allocation3] sm:$0xff]
    %738 = vmatprep.subr.bf16.mxu0 0
    %739 = vmatpush1.bf16.msra.mxu0 %v151
    %740 = vmatprep.subr.bf16.mxu0 0
    %741 = vmatpush1.bf16.msra.mxu0 %v152
    %742 = vmatprep.subr.bf16.mxu0 0
    %743 = vmatpush1.bf16.msra.mxu0 %v153
    %744 = vmatprep.subr.bf16.mxu0 0
    %745 = vmatpush1.bf16.msra.mxu0 %v154
    %746 = vmatprep.subr.bf16.mxu0 0
    %747 = vmatpush1.bf16.msra.mxu0 %v155
    %748 = vmatprep.subr.bf16.mxu0 0
    %749 = vmatpush1.bf16.msra.mxu0 %v156
    %750 = vmatprep.subr.bf16.mxu0 0
    %751 = vmatpush1.bf16.msra.mxu0 %v157
    %752 = vmatprep.subr.bf16.mxu0 0
    %753 = vmatpush1.bf16.msra.mxu0 %v158
    %754 = vmatprep.subr.bf16.mxu0 0
    %755 = vmatpush1.bf16.msra.mxu0 0
    %756 = vmatprep.subr.bf16.mxu0 0
    %757 = vmatpush1.bf16.msra.mxu0 0
    %758 = vmatprep.subr.bf16.mxu0 0
    %759 = vmatpush1.bf16.msra.mxu0 0
    %760 = vmatprep.subr.bf16.mxu0 0
    %761 = vmatpush1.bf16.msra.mxu0 0
    %762 = vmatprep.subr.bf16.mxu0 0
    %763 = vmatpush1.bf16.msra.mxu0 0
    %764 = vmatprep.subr.bf16.mxu0 0
    %765 = vmatpush1.bf16.msra.mxu0 0
    %766 = vmatprep.subr.bf16.mxu0 0
    %767 = vmatpush1.bf16.msra.mxu0 0
    %768 = vmatprep.subr.bf16.mxu0 0
    %769 = vmatpush1.bf16.msra.mxu0 0
    %770 = vmatprep.mubr.bf16.mxu0 0
    %771 = vmatmul.mubr.bf16.gmra.mrb[0].mxu0 %v737
    %v772 = vpop.f32.mrb[0].mxu0
    %v773 = vadd.f32 0.0, %v772
    %v774 = vpop.f32.mrb[0].mxu0
    %v775 = vpop.f32.mrb[0].mxu0
    %v776 = vadd.f32 0.0, %v775
    %v777 = vpop.f32.mrb[0].mxu0
    %778 = vdwg.mxu0
    %s779 = scalar_lea.vmem [#allocation4], 112
    %v780 = vld [vmem:[%s779] sm:$0xff]
    %v781 = vld [vmem:[%s779 + $0x8] sm:$0xff]
    %v782 = vadd.f32 %v780, %v773
    %v783 = vadd.f32 %v781, %v776
    %v784 = vld [vmem:[#allocation2] sm:$0xff]
    %v785 = vld [vmem:[#allocation2 + $0x8] sm:$0xff]
    %v786 = vmul.f32 %v784, %v96
    %v787 = vmul.f32 %v785, %v96
    %v788 = vmul.f32 %v101, %v782
    %v789 = vmul.f32 %v101, %v783
    %v790 = vadd.f32 %v786, %v788
    %v791 = vadd.f32 %v787, %v789
    %v792 = vunpack.c.l.bf16 %v737
    %v793 = vunpack.c.h.bf16 %v737
    %v794 = vsub.f32 %v790, %v792
    %v795 = vsub.f32 %v791, %v793
    %vm796 = vcmp.gt.f32.partialorder %v794, 1.0
    %vm797 = vcmp.gt.f32.partialorder %v795, 1.0
    %798 = vst [vmem:[#allocation2] sm:$0xff] %v794
    %799 = vst [vmem:[#allocation2 + $0x8] sm:$0xff] %v795
    %v800 = vsel %vm796, 1, 0
    %v801 = vsel %vm797, 1, 0
    %v802 = vcvt.s32.f32 %v800
    %v803 = vcvt.s32.f32 %v801
    %v804 = vpack.c.bf16 %v803, %v802
    %805 = vst [vmem:[#allocation3] sm:$0xff] %v804
    %s806 = scalar_lea.vmem [#allocation12], 112
    %807 = vst [vmem:[%s806] sm:$0xff] %v794
    %808 = vst [vmem:[%s806 + $0x8] sm:$0xff] %v795
    %v810 = vunpack.c.l.b16 %v804
    %v811 = vunpack.c.h.b16 %v804
    %v812 = vpack.c.b16 %v810, %v810
    %v813 = vpack.c.b16 %v811, %v811
    %s816 = scalar_lea.vmem [#allocation13], 56
    %817 = vst [vmem:[%s816] sm:$0xf] %v812
    %818 = vst [vmem:[%s816 + $0x4] sm:$0xf] %v813
    // Predicated region
    $region42: #{tpu_custom_call.1} parent=1 // pred_check
      _
    $region43: #{tpu_custom_call.1} parent=1 // pred_check_branch
      %820 = sbr.rel (0) target = $region45
    $region44: #{tpu_custom_call.1} parent=1 // pred_region
      %s822 = ssub.s32 2048, 2048
      %823 = vsyncadd [#allocation6], %s822
      %s824 = sshll.u32 [#allocation12], 4
      %s825 = int_to_ptr.vmem [resolvable:$true] %s824
      %830 = dma.vmem_to_hbm [thread:$0]  %s825, 2048, %s5, [#allocation6], 128, 128, 8
    $region45: #{tpu_custom_call.1} parent=1 // pred_fallthru
      _
    // Predicated region
    $region46: #{tpu_custom_call.1} parent=1 // pred_check
      _
    $region47: #{tpu_custom_call.1} parent=1 // pred_check_branch
      %832 = sbr.rel (0) target = $region49
    $region48: #{tpu_custom_call.1} parent=1 // pred_region
      %s834 = ssub.s32 1024, 1024
      %835 = vsyncadd [#allocation14], %s834
      %s836 = sshll.u32 [#allocation13], 4
      %s837 = int_to_ptr.vmem [resolvable:$true] %s836
      %842 = dma.vmem_to_hbm [thread:$0]  %s837, 1024, %s6, [#allocation14], 64, 64, 4
    $region49: #{tpu_custom_call.1} parent=1 // pred_fallthru
      _
    // Predicated region
    $region50: #{tpu_custom_call.1} parent=1 // pred_check
      _
    $region51: #{tpu_custom_call.1} parent=1 // pred_check_branch
      %844 = sbr.rel (0) target = $region53
    $region52: #{tpu_custom_call.1} parent=1 // pred_region
      %845 = dma.done [#allocation6], 2048
    $region53: #{tpu_custom_call.1} parent=1 // pred_fallthru
      _
    // Predicated region
    $region54: #{tpu_custom_call.1} parent=1 // pred_check
      _
    $region55: #{tpu_custom_call.1} parent=1 // pred_check_branch
      %847 = sbr.rel (0) target = $region57
    $region56: #{tpu_custom_call.1} parent=1 // pred_region
      %848 = dma.done [#allocation14], 1024
    $region57: #{tpu_custom_call.1} parent=1 // pred_fallthru
      _
    %849 = vsyncpa [#allocation5], 1
    %850 = vsyncpa [#allocation8], 1
    %851 = vsyncpa [#allocation11], 1
    %852 = vsyncpa [#allocation6], 1
    %853 = vsyncpa [#allocation14], 1

</llo_original>
